<compile_context>
chip_gen: v7x
topology: tpu7x:2x2x1
jax: 0.10.0
libtpu: 0.0.40
codegen_flags: <defaults>
</compile_context>

<pallas_src>
import functools
import math

import numpy as np
import jax
import jax.numpy as jnp
from jax import lax
from jax.experimental import pallas as pl
from jax.experimental.pallas import tpu as pltpu


# ------------------------------ fused kernel -------------------------------

def _fused_forward_kernel(x_ref, g1_ref, pk1_ref, p1_ref,
                          g2_ref, pk2_ref, p2_ref,
                          wf_ref, pkf_ref, wh_ref, bh_ref, cnt_ref,
                          o_ref, *, H, L, D, u, scale, eps):
    """One batch element: conv1 -> conv2 -> fc -> Q/K -> ProbSparse attention.

    x_ref  : (L, seq)            input rows of this batch element
    g1_ref : (seq, C1*W1)        conv1 folded into a dense matmul
    pk1_ref: (3, 1, C1*W1)       [bias; ln_gamma; ln_beta] for stage 1
    p1_ref : (C1*W1, C1*W1)      block-diagonal per-channel averaging projector
    g2_ref / pk2_ref / p2_ref    same for conv stage 2
    wf_ref : (C2*W2, hid)        fc weight (transposed)
    pkf_ref: (3, 1, hid)         [fc bias; ln_gamma; ln_beta]
    wh_ref : (2H, hid, D)        per-head Q/K weights [Wq_0, Wk_0, Wq_1, ...]
    bh_ref : (2H, 1, D)          per-head Q/K biases
    cnt_ref: (L, L)              duplicate-aware sampled-key counts
    o_ref  : (L, L)              head-averaged adjacency for this batch element
    """
    f32 = jnp.float32

    def conv_relu_ln(x, g_ref, pk_ref, p_ref):
        # Conv stage as one dense matmul over all rows; the per-(row, channel)
        # LayerNorm mean/var are taken with the block-diagonal averaging
        # projector (MXU work instead of reshapes/transposes).
        y = jnp.dot(x, g_ref[...], preferred_element_type=f32) + pk_ref[0]
        y = jnp.maximum(y, 0.0)
        mu = jnp.dot(y, p_ref[...], preferred_element_type=f32)
        yc = y - mu
        var = jnp.dot(yc * yc, p_ref[...], preferred_element_type=f32)
        return yc * lax.rsqrt(var + eps) * pk_ref[1] + pk_ref[2]

    h1 = conv_relu_ln(x_ref[...], g1_ref, pk1_ref, p1_ref)      # (L, C1*W1)
    h2 = conv_relu_ln(h1, g2_ref, pk2_ref, p2_ref)               # (L, C2*W2)

    # fc + ReLU + LayerNorm(hidden)  (full-row normalization)
    y = jnp.dot(h2, wf_ref[...], preferred_element_type=f32) + pkf_ref[0]
    y = jnp.maximum(y, 0.0)
    mu = jnp.mean(y, axis=-1, keepdims=True)
    yc = y - mu
    var = jnp.mean(yc * yc, axis=-1, keepdims=True)
    h3 = yc * lax.rsqrt(var + eps) * pkf_ref[1] + pkf_ref[2]     # (L, hid)

    # ---- ProbSparse attention over this batch element, all heads ----------
    # masks generated in-kernel (VPU) — only the cnt plane is DMA'd
    rows = lax.broadcasted_iota(jnp.int32, (L, L), 0)
    cols = lax.broadcasted_iota(jnp.int32, (L, L), 1)
    eyef = (rows == cols).astype(f32)
    lowt = cols < rows                       # strict lower triangle (j < i)
    cnt = cnt_ref[...]
    sel = cnt > 0.0                          # sampled-key membership
    neg = f32(-1e30)
    inv_L = f32(1.0 / L)

    acc = jnp.zeros((L, L), f32)
    for h in range(H):                       # H is tiny -> static unroll
        q = jnp.dot(h3, wh_ref[2 * h], preferred_element_type=f32) + bh_ref[2 * h]
        k = jnp.dot(h3, wh_ref[2 * h + 1],
                    preferred_element_type=f32) + bh_ref[2 * h + 1]
        # S = Q @ K^T   (same NT contraction flash attention uses)
        s = lax.dot_general(q, k, (((1,), (1,)), ((), ())),
                            preferred_element_type=f32)           # (L, L)

        # sparsity measure over the sampled keys: M = max_s - sum_s / L
        sum_c = jnp.sum(s * cnt, axis=-1, keepdims=True)          # (L, 1)
        max_c = jnp.max(jnp.where(sel, s, neg), axis=-1, keepdims=True)
        m_col = max_c - sum_c * inv_L                             # (L, 1)
        # move M onto lanes exactly (masked sublane reduce keeps bit equality
        # for the deterministic tie-break below)
        m_row = jnp.sum(m_col * eyef, axis=0, keepdims=True)      # (1, L)

        # top-u query rows; ties resolved towards the lower index
        beats = jnp.logical_or(m_row > m_col,
                               jnp.logical_and(m_row == m_col, lowt))
        rank = jnp.sum(beats.astype(f32), axis=-1, keepdims=True)
        in_top = rank < f32(u)

        # row softmax (exact division) and ONE combined gate for the top-u
        # scatter and masked_fill(attn < 1/L, 0)
        ss = s * f32(scale)
        p = jnp.exp(ss - jnp.max(ss, axis=-1, keepdims=True))
        attn = p / jnp.sum(p, axis=-1, keepdims=True)
        acc = acc + jnp.where(jnp.logical_and(in_top, attn >= inv_L), attn, 0.0)

    o_ref[...] = acc * f32(1.0 / H)          # mean over heads


# ------------------------------ parameters ---------------------------------

def init_params(key, cfg):
    """Xavier-normal weights, bias = 0.1 (matches init_weights); LN = (1, 0)."""
    conv_dim, ks, st = cfg["conv_dim"], cfg["kernel_size"], cfg["stride"]
    hid = cfg["hidden_dim"]
    keys = jax.random.split(key, len(conv_dim) + 3)
    params = {"conv": [], "ln": []}
    in_c, l_cur = 1, cfg["seq_len"]
    for i, (c, k_, s_) in enumerate(zip(conv_dim, ks, st)):
        std = math.sqrt(2.0 / (in_c * k_ + c * k_))
        w = std * jax.random.normal(keys[i], (c, in_c, k_), jnp.float32)
        b = jnp.full((c,), 0.1, jnp.float32)
        params["conv"].append((w, b))
        l_cur = (l_cur - k_) // s_ + 1
        params["ln"].append((jnp.ones((l_cur,), jnp.float32),
                             jnp.zeros((l_cur,), jnp.float32)))
        in_c = c
    fc_in = conv_dim[-1] * l_cur
    std = math.sqrt(2.0 / (fc_in + hid))
    params["fc_w"] = std * jax.random.normal(keys[-3], (hid, fc_in), jnp.float32)
    params["fc_b"] = jnp.full((hid,), 0.1, jnp.float32)
    params["ln_final"] = (jnp.ones((hid,), jnp.float32),
                          jnp.zeros((hid,), jnp.float32))
    std = math.sqrt(2.0 / (hid + hid))
    params["wq"] = std * jax.random.normal(keys[-2], (hid, hid), jnp.float32)
    params["wk"] = std * jax.random.normal(keys[-1], (hid, hid), jnp.float32)
    params["bq"] = jnp.full((hid,), 0.1, jnp.float32)
    params["bk"] = jnp.full((hid,), 0.1, jnp.float32)
    return params


# ------------------------------ forward pass --------------------------------

def graph_learning_probsparse_attention(params, x, cfg, sample_key):
    """x: (B, nodes, seq_len) f32 -> adjacency (B, nodes, nodes) f32."""
    B, nodes, seq = x.shape
    H, hid, factor = cfg["n_head"], cfg["hidden_dim"], cfg["factor"]
    s1, s2 = cfg["stride"]
    D = hid // H
    L = nodes
    eps = 1e-5

    # ---- parameter-side layout prep (tiny, weight-only; no activations) ----
    (w1, b1), (w2, b2) = params["conv"]
    C1, _, K1 = w1.shape
    C2, _, K2 = w2.shape
    W1 = (seq - K1) // s1 + 1
    W2 = (W1 - K2) // s2 + 1

    # conv-as-matmul folding matrices (0/1 numpy constants x conv weights)
    e1 = np.zeros((K1, seq, W1), np.float32)
    e2 = np.zeros((K2, W1, W2), np.float32)
    for k in range(K1):
        e1[k, np.arange(W1) * s1 + k, np.arange(W1)] = 1.0
    for k in range(K2):
        e2[k, np.arange(W2) * s2 + k, np.arange(W2)] = 1.0
    g1 = jnp.einsum("ck,klw->lcw", w1[:, 0, :],
                    jnp.asarray(e1)).reshape(seq, C1 * W1)
    g2 = jnp.einsum("dck,klw->cldw", w2,
                    jnp.asarray(e2)).reshape(C1 * W1, C2 * W2)

    # block-diagonal averaging projectors for the per-(row, channel) LayerNorm
    p1 = jnp.asarray(np.kron(np.eye(C1, dtype=np.float32),
                             np.full((W1, W1), 1.0 / W1, np.float32)))
    p2 = jnp.asarray(np.kron(np.eye(C2, dtype=np.float32),
                             np.full((W2, W2), 1.0 / W2, np.float32)))

    # packed [bias; gamma; beta] per stage -> one DMA descriptor each
    ln1_g, ln1_b = params["ln"][0]
    ln2_g, ln2_b = params["ln"][1]
    pk1 = jnp.stack([jnp.repeat(b1, W1), jnp.tile(ln1_g, C1),
                     jnp.tile(ln1_b, C1)], 0)[:, None, :]          # (3,1,C1*W1)
    pk2 = jnp.stack([jnp.repeat(b2, W2), jnp.tile(ln2_g, C2),
                     jnp.tile(ln2_b, C2)], 0)[:, None, :]          # (3,1,C2*W2)
    lnf_g, lnf_b = params["ln_final"]
    pkf = jnp.stack([params["fc_b"], lnf_g, lnf_b], 0)[:, None, :]  # (3,1,hid)
    wf = params["fc_w"].T                                           # (C2*W2,hid)

    # per-head Q/K projection weights stacked [Wq_0, Wk_0, Wq_1, Wk_1, ...]
    wq_t, wk_t = params["wq"].T, params["wk"].T
    w_heads = jnp.stack(
        [m[:, h * D:(h + 1) * D] for h in range(H) for m in (wq_t, wk_t)], 0)
    b_heads = jnp.stack(
        [b[h * D:(h + 1) * D].reshape(1, D)
         for h in range(H) for b in (params["bq"], params["bk"])], 0)

    # ---- ProbSparse sampling (one draw shared across batch & heads) --------
    # TODO(synk): torch.randint's RNG stream cannot be reproduced bit-exactly;
    # a jax.random draw with identical sampling semantics is used instead.
    log_l = int(np.ceil(np.log(L)))
    u_part = min(2 * factor * log_l, L)
    u = min(factor * log_l, L)
    idx = jax.random.randint(sample_key, (L, u_part), 0, L)
    cnt = jnp.zeros((L, L), jnp.float32).at[jnp.arange(L)[:, None], idx].add(1.0)

    scale = 1.0 / math.sqrt(D)
    kernel = functools.partial(_fused_forward_kernel, H=H, L=L, D=D, u=u,
                               scale=scale, eps=eps)

    return pl.pallas_call(
        kernel,
        out_shape=jax.ShapeDtypeStruct((B, L, L), jnp.float32),
        grid=(B,),
        in_specs=[
            pl.BlockSpec((None, L, seq), lambda b: (b, 0, 0)),        # x rows
            pl.BlockSpec((seq, C1 * W1), lambda b: (0, 0)),           # G1
            pl.BlockSpec((3, 1, C1 * W1), lambda b: (0, 0, 0)),       # pk1
            pl.BlockSpec((C1 * W1, C1 * W1), lambda b: (0, 0)),       # P1
            pl.BlockSpec((C1 * W1, C2 * W2), lambda b: (0, 0)),       # G2
            pl.BlockSpec((3, 1, C2 * W2), lambda b: (0, 0, 0)),       # pk2
            pl.BlockSpec((C2 * W2, C2 * W2), lambda b: (0, 0)),       # P2
            pl.BlockSpec((C2 * W2, hid), lambda b: (0, 0)),           # Wf
            pl.BlockSpec((3, 1, hid), lambda b: (0, 0, 0)),           # pkf
            pl.BlockSpec((2 * H, hid, D), lambda b: (0, 0, 0)),       # W_heads
            pl.BlockSpec((2 * H, 1, D), lambda b: (0, 0, 0)),         # b_heads
            pl.BlockSpec((L, L), lambda b: (0, 0)),                   # cnt
        ],
        out_specs=pl.BlockSpec((None, L, L), lambda b: (b, 0, 0)),
        compiler_params=pltpu.CompilerParams(
            dimension_semantics=("parallel",)),  # v7x: one batch per TensorCore
    )(x, g1, pk1, p1, g2, pk2, p2, wf, pkf, w_heads, b_heads, cnt)


# ---------------------------------- main -------------------------------------

if __name__ == "__main__":
    cfg = dict(batch_size=2, nodes_num=8, n_head=2, seq_len=32,
               conv_dim=[4, 8], kernel_size=[4, 3], stride=[2, 2],
               hidden_dim=16, factor=1, dropout_rate=0.1)  # dropout unused in fwd

    root = jax.random.PRNGKey(0)
    k_param, k_x, k_samp = jax.random.split(root, 3)

    params = init_params(k_param, cfg)
    x = jax.random.normal(
        k_x, (cfg["batch_size"], cfg["nodes_num"], cfg["seq_len"]), jnp.float32)

    fwd = jax.jit(
        lambda p, xx, kk: graph_learning_probsparse_attention(p, xx, cfg, kk))
    out = jax.block_until_ready(fwd(params, x, k_samp))

    assert out.shape == (cfg["batch_size"], cfg["nodes_num"], cfg["nodes_num"])
    assert bool(jnp.all(jnp.isfinite(out)))
    print("KERNEL_OK")
</pallas_src>

<mosaic_0001>
module attributes {stable_mosaic.version = 11 : i64} {
  func.func private @main(%arg0: i32) attributes {dimension_semantics = [#tpu.dimension_semantics<core_parallel>], iteration_bounds = array<i64: 2>, tpu.core_type = #tpu.core_type<sc_scalar_subcore>, window_params = []} {
    return
  }
}

module attributes {stable_mosaic.version = 11 : i64} {
  func.func private @main(%arg0: i32) attributes {dimension_semantics = [#tpu.dimension_semantics<core_parallel>], iteration_bounds = array<i64: 2>, tpu.core_type = #tpu.core_type<sc_scalar_subcore>, window_params = []} {
    return
  }
}

module attributes {stable_mosaic.version = 11 : i64} {
  func.func @_fused_forward_kernel(%arg0: i32, %arg1: memref<1x8x32xf32, #tpu.memory_space<vmem>>, %arg2: memref<32x60xf32, #tpu.memory_space<vmem>>, %arg3: memref<3x1x60xf32, #tpu.memory_space<vmem>>, %arg4: memref<60x60xf32, #tpu.memory_space<vmem>>, %arg5: memref<60x56xf32, #tpu.memory_space<vmem>>, %arg6: memref<3x1x56xf32, #tpu.memory_space<vmem>>, %arg7: memref<56x56xf32, #tpu.memory_space<vmem>>, %arg8: memref<56x16xf32, #tpu.memory_space<vmem>>, %arg9: memref<3x1x16xf32, #tpu.memory_space<vmem>>, %arg10: memref<4x16x8xf32, #tpu.memory_space<vmem>>, %arg11: memref<4x1x8xf32, #tpu.memory_space<vmem>>, %arg12: memref<8x8xf32, #tpu.memory_space<vmem>>, %arg13: memref<1x8x8xf32, #tpu.memory_space<vmem>>) attributes {dimension_semantics = [#tpu.dimension_semantics<parallel>], iteration_bounds = array<i64: 2>, scalar_prefetch = 0 : i64, scratch_operands = 0 : i64, tpu.core_type = #tpu.core_type<tc>, window_params = [{transform_indices = @transform_0, window_bounds = array<i64: 1, 8, 32>}, {pipeline_mode = #tpu.pipeline_mode<synchronous>, transform_indices = @transform_1, window_bounds = array<i64: 32, 60>}, {pipeline_mode = #tpu.pipeline_mode<synchronous>, transform_indices = @transform_2, window_bounds = array<i64: 3, 1, 60>}, {pipeline_mode = #tpu.pipeline_mode<synchronous>, transform_indices = @transform_3, window_bounds = array<i64: 60, 60>}, {pipeline_mode = #tpu.pipeline_mode<synchronous>, transform_indices = @transform_4, window_bounds = array<i64: 60, 56>}, {pipeline_mode = #tpu.pipeline_mode<synchronous>, transform_indices = @transform_5, window_bounds = array<i64: 3, 1, 56>}, {pipeline_mode = #tpu.pipeline_mode<synchronous>, transform_indices = @transform_6, window_bounds = array<i64: 56, 56>}, {pipeline_mode = #tpu.pipeline_mode<synchronous>, transform_indices = @transform_7, window_bounds = array<i64: 56, 16>}, {pipeline_mode = #tpu.pipeline_mode<synchronous>, transform_indices = @transform_8, window_bounds = array<i64: 3, 1, 16>}, {pipeline_mode = #tpu.pipeline_mode<synchronous>, transform_indices = @transform_9, window_bounds = array<i64: 4, 16, 8>}, {pipeline_mode = #tpu.pipeline_mode<synchronous>, transform_indices = @transform_10, window_bounds = array<i64: 4, 1, 8>}, {pipeline_mode = #tpu.pipeline_mode<synchronous>, transform_indices = @transform_11, window_bounds = array<i64: 8, 8>}, {transform_indices = @transform_12, window_bounds = array<i64: 1, 8, 8>}]} {
    %c0 = arith.constant 0 : index
    %c0_0 = arith.constant 0 : index
    %c0_1 = arith.constant 0 : index
    %0 = vector.load %arg1[%c0, %c0_0, %c0_1] : memref<1x8x32xf32, #tpu.memory_space<vmem>>, vector<1x8x32xf32>
    %1 = vector.shape_cast %0 : vector<1x8x32xf32> to vector<8x32xf32>
    %c0_2 = arith.constant 0 : index
    %c0_3 = arith.constant 0 : index
    %2 = vector.load %arg2[%c0_2, %c0_3] : memref<32x60xf32, #tpu.memory_space<vmem>>, vector<32x60xf32>
    %cst = arith.constant dense<0.000000e+00> : vector<8x60xf32>
    %3 = tpu.matmul %1, %2, %cst {dimension_numbers = #tpu.dot_dimension_numbers<[1], [0], [0], [1], [0, 0, 1, 1], [], []>} : vector<8x32xf32>, vector<32x60xf32>, vector<8x60xf32> -> vector<8x60xf32>
    %c0_4 = arith.constant 0 : index
    %c0_5 = arith.constant 0 : index
    %c0_6 = arith.constant 0 : index
    %4 = vector.load %arg3[%c0_4, %c0_5, %c0_6] : memref<3x1x60xf32, #tpu.memory_space<vmem>>, vector<1x1x60xf32>
    %5 = vector.shape_cast %4 : vector<1x1x60xf32> to vector<1x60xf32>
    %6 = vector.broadcast %5 : vector<1x60xf32> to vector<8x60xf32>
    %7 = arith.addf %3, %6 : vector<8x60xf32>
    %cst_7 = arith.constant 0.000000e+00 : f32
    %8 = vector.broadcast %cst_7 : f32 to vector<8x60xf32>
    %9 = arith.maximumf %7, %8 : vector<8x60xf32>
    %c0_8 = arith.constant 0 : index
    %c0_9 = arith.constant 0 : index
    %10 = vector.load %arg4[%c0_8, %c0_9] : memref<60x60xf32, #tpu.memory_space<vmem>>, vector<60x60xf32>
    %cst_10 = arith.constant dense<0.000000e+00> : vector<8x60xf32>
    %11 = tpu.matmul %9, %10, %cst_10 {dimension_numbers = #tpu.dot_dimension_numbers<[1], [0], [0], [1], [0, 0, 1, 1], [], []>} : vector<8x60xf32>, vector<60x60xf32>, vector<8x60xf32> -> vector<8x60xf32>
    %12 = arith.subf %9, %11 : vector<8x60xf32>
    %13 = arith.mulf %12, %12 : vector<8x60xf32>
    %c0_11 = arith.constant 0 : index
    %c0_12 = arith.constant 0 : index
    %14 = vector.load %arg4[%c0_11, %c0_12] : memref<60x60xf32, #tpu.memory_space<vmem>>, vector<60x60xf32>
    %cst_13 = arith.constant dense<0.000000e+00> : vector<8x60xf32>
    %15 = tpu.matmul %13, %14, %cst_13 {dimension_numbers = #tpu.dot_dimension_numbers<[1], [0], [0], [1], [0, 0, 1, 1], [], []>} : vector<8x60xf32>, vector<60x60xf32>, vector<8x60xf32> -> vector<8x60xf32>
    %cst_14 = arith.constant 9.99999974E-6 : f32
    %16 = vector.broadcast %cst_14 : f32 to vector<8x60xf32>
    %17 = arith.addf %15, %16 : vector<8x60xf32>
    %18 = math.rsqrt %17 : vector<8x60xf32>
    %19 = arith.mulf %12, %18 : vector<8x60xf32>
    %c1 = arith.constant 1 : index
    %c0_15 = arith.constant 0 : index
    %c0_16 = arith.constant 0 : index
    %20 = vector.load %arg3[%c1, %c0_15, %c0_16] : memref<3x1x60xf32, #tpu.memory_space<vmem>>, vector<1x1x60xf32>
    %21 = vector.shape_cast %20 : vector<1x1x60xf32> to vector<1x60xf32>
    %22 = vector.broadcast %21 : vector<1x60xf32> to vector<8x60xf32>
    %23 = arith.mulf %19, %22 : vector<8x60xf32>
    %c2 = arith.constant 2 : index
    %c0_17 = arith.constant 0 : index
    %c0_18 = arith.constant 0 : index
    %24 = vector.load %arg3[%c2, %c0_17, %c0_18] : memref<3x1x60xf32, #tpu.memory_space<vmem>>, vector<1x1x60xf32>
    %25 = vector.shape_cast %24 : vector<1x1x60xf32> to vector<1x60xf32>
    %26 = vector.broadcast %25 : vector<1x60xf32> to vector<8x60xf32>
    %27 = arith.addf %23, %26 : vector<8x60xf32>
    %c0_19 = arith.constant 0 : index
    %c0_20 = arith.constant 0 : index
    %28 = vector.load %arg5[%c0_19, %c0_20] : memref<60x56xf32, #tpu.memory_space<vmem>>, vector<60x56xf32>
    %cst_21 = arith.constant dense<0.000000e+00> : vector<8x56xf32>
    %29 = tpu.matmul %27, %28, %cst_21 {dimension_numbers = #tpu.dot_dimension_numbers<[1], [0], [0], [1], [0, 0, 1, 1], [], []>} : vector<8x60xf32>, vector<60x56xf32>, vector<8x56xf32> -> vector<8x56xf32>
    %c0_22 = arith.constant 0 : index
    %c0_23 = arith.constant 0 : index
    %c0_24 = arith.constant 0 : index
    %30 = vector.load %arg6[%c0_22, %c0_23, %c0_24] : memref<3x1x56xf32, #tpu.memory_space<vmem>>, vector<1x1x56xf32>
    %31 = vector.shape_cast %30 : vector<1x1x56xf32> to vector<1x56xf32>
    %32 = vector.broadcast %31 : vector<1x56xf32> to vector<8x56xf32>
    %33 = arith.addf %29, %32 : vector<8x56xf32>
    %cst_25 = arith.constant 0.000000e+00 : f32
    %34 = vector.broadcast %cst_25 : f32 to vector<8x56xf32>
    %35 = arith.maximumf %33, %34 : vector<8x56xf32>
    %c0_26 = arith.constant 0 : index
    %c0_27 = arith.constant 0 : index
    %36 = vector.load %arg7[%c0_26, %c0_27] : memref<56x56xf32, #tpu.memory_space<vmem>>, vector<56x56xf32>
    %cst_28 = arith.constant dense<0.000000e+00> : vector<8x56xf32>
    %37 = tpu.matmul %35, %36, %cst_28 {dimension_numbers = #tpu.dot_dimension_numbers<[1], [0], [0], [1], [0, 0, 1, 1], [], []>} : vector<8x56xf32>, vector<56x56xf32>, vector<8x56xf32> -> vector<8x56xf32>
    %38 = arith.subf %35, %37 : vector<8x56xf32>
    %39 = arith.mulf %38, %38 : vector<8x56xf32>
    %c0_29 = arith.constant 0 : index
    %c0_30 = arith.constant 0 : index
    %40 = vector.load %arg7[%c0_29, %c0_30] : memref<56x56xf32, #tpu.memory_space<vmem>>, vector<56x56xf32>
    %cst_31 = arith.constant dense<0.000000e+00> : vector<8x56xf32>
    %41 = tpu.matmul %39, %40, %cst_31 {dimension_numbers = #tpu.dot_dimension_numbers<[1], [0], [0], [1], [0, 0, 1, 1], [], []>} : vector<8x56xf32>, vector<56x56xf32>, vector<8x56xf32> -> vector<8x56xf32>
    %cst_32 = arith.constant 9.99999974E-6 : f32
    %42 = vector.broadcast %cst_32 : f32 to vector<8x56xf32>
    %43 = arith.addf %41, %42 : vector<8x56xf32>
    %44 = math.rsqrt %43 : vector<8x56xf32>
    %45 = arith.mulf %38, %44 : vector<8x56xf32>
    %c1_33 = arith.constant 1 : index
    %c0_34 = arith.constant 0 : index
    %c0_35 = arith.constant 0 : index
    %46 = vector.load %arg6[%c1_33, %c0_34, %c0_35] : memref<3x1x56xf32, #tpu.memory_space<vmem>>, vector<1x1x56xf32>
    %47 = vector.shape_cast %46 : vector<1x1x56xf32> to vector<1x56xf32>
    %48 = vector.broadcast %47 : vector<1x56xf32> to vector<8x56xf32>
    %49 = arith.mulf %45, %48 : vector<8x56xf32>
    %c2_36 = arith.constant 2 : index
    %c0_37 = arith.constant 0 : index
    %c0_38 = arith.constant 0 : index
    %50 = vector.load %arg6[%c2_36, %c0_37, %c0_38] : memref<3x1x56xf32, #tpu.memory_space<vmem>>, vector<1x1x56xf32>
    %51 = vector.shape_cast %50 : vector<1x1x56xf32> to vector<1x56xf32>
    %52 = vector.broadcast %51 : vector<1x56xf32> to vector<8x56xf32>
    %53 = arith.addf %49, %52 : vector<8x56xf32>
    %c0_39 = arith.constant 0 : index
    %c0_40 = arith.constant 0 : index
    %54 = vector.load %arg8[%c0_39, %c0_40] : memref<56x16xf32, #tpu.memory_space<vmem>>, vector<56x16xf32>
    %cst_41 = arith.constant dense<0.000000e+00> : vector<8x16xf32>
    %55 = tpu.matmul %53, %54, %cst_41 {dimension_numbers = #tpu.dot_dimension_numbers<[1], [0], [0], [1], [0, 0, 1, 1], [], []>} : vector<8x56xf32>, vector<56x16xf32>, vector<8x16xf32> -> vector<8x16xf32>
    %c0_42 = arith.constant 0 : index
    %c0_43 = arith.constant 0 : index
    %c0_44 = arith.constant 0 : index
    %56 = vector.load %arg9[%c0_42, %c0_43, %c0_44] : memref<3x1x16xf32, #tpu.memory_space<vmem>>, vector<1x1x16xf32>
    %57 = vector.shape_cast %56 : vector<1x1x16xf32> to vector<1x16xf32>
    %58 = vector.broadcast %57 : vector<1x16xf32> to vector<8x16xf32>
    %59 = arith.addf %55, %58 : vector<8x16xf32>
    %cst_45 = arith.constant 0.000000e+00 : f32
    %60 = vector.broadcast %cst_45 : f32 to vector<8x16xf32>
    %61 = arith.maximumf %59, %60 : vector<8x16xf32>
    %cst_46 = arith.constant dense<0.000000e+00> : vector<8xf32>
    %62 = vector.multi_reduction <add>, %61, %cst_46 [1] : vector<8x16xf32> to vector<8xf32>
    %63 = vector.shape_cast %62 : vector<8xf32> to vector<8x1xf32>
    %cst_47 = arith.constant 1.600000e+01 : f32
    %64 = vector.broadcast %cst_47 : f32 to vector<8x1xf32>
    %65 = arith.divf %63, %64 : vector<8x1xf32>
    %66 = vector.broadcast %65 : vector<8x1xf32> to vector<8x16xf32>
    %67 = arith.subf %61, %66 : vector<8x16xf32>
    %68 = arith.mulf %67, %67 : vector<8x16xf32>
    %cst_48 = arith.constant dense<0.000000e+00> : vector<8xf32>
    %69 = vector.multi_reduction <add>, %68, %cst_48 [1] : vector<8x16xf32> to vector<8xf32>
    %70 = vector.shape_cast %69 : vector<8xf32> to vector<8x1xf32>
    %cst_49 = arith.constant 1.600000e+01 : f32
    %71 = vector.broadcast %cst_49 : f32 to vector<8x1xf32>
    %72 = arith.divf %70, %71 : vector<8x1xf32>
    %cst_50 = arith.constant 9.99999974E-6 : f32
    %73 = vector.broadcast %cst_50 : f32 to vector<8x1xf32>
    %74 = arith.addf %72, %73 : vector<8x1xf32>
    %75 = math.rsqrt %74 : vector<8x1xf32>
    %76 = vector.broadcast %75 : vector<8x1xf32> to vector<8x16xf32>
    %77 = arith.mulf %67, %76 : vector<8x16xf32>
    %c1_51 = arith.constant 1 : index
    %c0_52 = arith.constant 0 : index
    %c0_53 = arith.constant 0 : index
    %78 = vector.load %arg9[%c1_51, %c0_52, %c0_53] : memref<3x1x16xf32, #tpu.memory_space<vmem>>, vector<1x1x16xf32>
    %79 = vector.shape_cast %78 : vector<1x1x16xf32> to vector<1x16xf32>
    %80 = vector.broadcast %79 : vector<1x16xf32> to vector<8x16xf32>
    %81 = arith.mulf %77, %80 : vector<8x16xf32>
    %c2_54 = arith.constant 2 : index
    %c0_55 = arith.constant 0 : index
    %c0_56 = arith.constant 0 : index
    %82 = vector.load %arg9[%c2_54, %c0_55, %c0_56] : memref<3x1x16xf32, #tpu.memory_space<vmem>>, vector<1x1x16xf32>
    %83 = vector.shape_cast %82 : vector<1x1x16xf32> to vector<1x16xf32>
    %84 = vector.broadcast %83 : vector<1x16xf32> to vector<8x16xf32>
    %85 = arith.addf %81, %84 : vector<8x16xf32>
    %86 = tpu.iota {dimensions = array<i32: 0>} : vector<8x8xi32>
    %87 = tpu.iota {dimensions = array<i32: 1>} : vector<8x8xi32>
    %88 = arith.cmpi eq, %86, %87 : vector<8x8xi32>
    %89 = arith.extui %88 : vector<8x8xi1> to vector<8x8xi32>
    %90 = arith.sitofp %89 : vector<8x8xi32> to vector<8x8xf32>
    %91 = arith.cmpi slt, %87, %86 : vector<8x8xi32>
    %c0_57 = arith.constant 0 : index
    %c0_58 = arith.constant 0 : index
    %92 = vector.load %arg12[%c0_57, %c0_58] : memref<8x8xf32, #tpu.memory_space<vmem>>, vector<8x8xf32>
    %cst_59 = arith.constant 0.000000e+00 : f32
    %93 = vector.broadcast %cst_59 : f32 to vector<8x8xf32>
    %94 = arith.cmpf ogt, %92, %93 : vector<8x8xf32>
    %cst_60 = arith.constant 0.000000e+00 : f32
    %95 = vector.broadcast %cst_60 : f32 to vector<8x8xf32>
    %c0_61 = arith.constant 0 : index
    %c0_62 = arith.constant 0 : index
    %c0_63 = arith.constant 0 : index
    %96 = vector.load %arg10[%c0_61, %c0_62, %c0_63] : memref<4x16x8xf32, #tpu.memory_space<vmem>>, vector<1x16x8xf32>
    %97 = vector.shape_cast %96 : vector<1x16x8xf32> to vector<16x8xf32>
    %cst_64 = arith.constant dense<0.000000e+00> : vector<8x8xf32>
    %98 = tpu.matmul %85, %97, %cst_64 {dimension_numbers = #tpu.dot_dimension_numbers<[1], [0], [0], [1], [0, 0, 1, 1], [], []>} : vector<8x16xf32>, vector<16x8xf32>, vector<8x8xf32> -> vector<8x8xf32>
    %c0_65 = arith.constant 0 : index
    %c0_66 = arith.constant 0 : index
    %c0_67 = arith.constant 0 : index
    %99 = vector.load %arg11[%c0_65, %c0_66, %c0_67] : memref<4x1x8xf32, #tpu.memory_space<vmem>>, vector<1x1x8xf32>
    %100 = vector.shape_cast %99 : vector<1x1x8xf32> to vector<1x8xf32>
    %101 = vector.broadcast %100 : vector<1x8xf32> to vector<8x8xf32>
    %102 = arith.addf %98, %101 : vector<8x8xf32>
    %c1_68 = arith.constant 1 : index
    %c0_69 = arith.constant 0 : index
    %c0_70 = arith.constant 0 : index
    %103 = vector.load %arg10[%c1_68, %c0_69, %c0_70] : memref<4x16x8xf32, #tpu.memory_space<vmem>>, vector<1x16x8xf32>
    %104 = vector.shape_cast %103 : vector<1x16x8xf32> to vector<16x8xf32>
    %cst_71 = arith.constant dense<0.000000e+00> : vector<8x8xf32>
    %105 = tpu.matmul %85, %104, %cst_71 {dimension_numbers = #tpu.dot_dimension_numbers<[1], [0], [0], [1], [0, 0, 1, 1], [], []>} : vector<8x16xf32>, vector<16x8xf32>, vector<8x8xf32> -> vector<8x8xf32>
    %c1_72 = arith.constant 1 : index
    %c0_73 = arith.constant 0 : index
    %c0_74 = arith.constant 0 : index
    %106 = vector.load %arg11[%c1_72, %c0_73, %c0_74] : memref<4x1x8xf32, #tpu.memory_space<vmem>>, vector<1x1x8xf32>
    %107 = vector.shape_cast %106 : vector<1x1x8xf32> to vector<1x8xf32>
    %108 = vector.broadcast %107 : vector<1x8xf32> to vector<8x8xf32>
    %109 = arith.addf %105, %108 : vector<8x8xf32>
    %cst_75 = arith.constant dense<0.000000e+00> : vector<8x8xf32>
    %110 = tpu.matmul %102, %109, %cst_75 {dimension_numbers = #tpu.dot_dimension_numbers<[1], [1], [0], [0], [0, 0, 1, 0], [], []>} : vector<8x8xf32>, vector<8x8xf32>, vector<8x8xf32> -> vector<8x8xf32>
    %111 = arith.mulf %110, %92 : vector<8x8xf32>
    %cst_76 = arith.constant dense<0.000000e+00> : vector<8xf32>
    %112 = vector.multi_reduction <add>, %111, %cst_76 [1] : vector<8x8xf32> to vector<8xf32>
    %113 = vector.shape_cast %112 : vector<8xf32> to vector<8x1xf32>
    %cst_77 = arith.constant -1.000000e+30 : f32
    %114 = vector.broadcast %cst_77 : f32 to vector<8x8xf32>
    %115 = arith.select %94, %110, %114 : vector<8x8xi1>, vector<8x8xf32>
    %cst_78 = arith.constant dense<0xFF800000> : vector<8xf32>
    %116 = vector.multi_reduction <maximumf>, %115, %cst_78 [1] : vector<8x8xf32> to vector<8xf32>
    %117 = vector.shape_cast %116 : vector<8xf32> to vector<8x1xf32>
    %cst_79 = arith.constant 1.250000e-01 : f32
    %118 = vector.broadcast %cst_79 : f32 to vector<8x1xf32>
    %119 = arith.mulf %113, %118 : vector<8x1xf32>
    %120 = arith.subf %117, %119 : vector<8x1xf32>
    %121 = vector.broadcast %120 : vector<8x1xf32> to vector<8x8xf32>
    %122 = arith.mulf %121, %90 : vector<8x8xf32>
    %cst_80 = arith.constant dense<0.000000e+00> : vector<8xf32>
    %123 = vector.multi_reduction <add>, %122, %cst_80 [0] : vector<8x8xf32> to vector<8xf32>
    %124 = vector.shape_cast %123 : vector<8xf32> to vector<1x8xf32>
    %125 = vector.broadcast %124 : vector<1x8xf32> to vector<8x8xf32>
    %126 = vector.broadcast %120 : vector<8x1xf32> to vector<8x8xf32>
    %127 = arith.cmpf ogt, %125, %126 : vector<8x8xf32>
    %128 = vector.broadcast %124 : vector<1x8xf32> to vector<8x8xf32>
    %129 = vector.broadcast %120 : vector<8x1xf32> to vector<8x8xf32>
    %130 = arith.cmpf oeq, %128, %129 : vector<8x8xf32>
    %131 = arith.andi %130, %91 : vector<8x8xi1>
    %132 = arith.ori %127, %131 : vector<8x8xi1>
    %133 = arith.extui %132 : vector<8x8xi1> to vector<8x8xi32>
    %134 = arith.sitofp %133 : vector<8x8xi32> to vector<8x8xf32>
    %cst_81 = arith.constant dense<0.000000e+00> : vector<8xf32>
    %135 = vector.multi_reduction <add>, %134, %cst_81 [1] : vector<8x8xf32> to vector<8xf32>
    %136 = vector.shape_cast %135 : vector<8xf32> to vector<8x1xf32>
    %cst_82 = arith.constant 3.000000e+00 : f32
    %137 = vector.broadcast %cst_82 : f32 to vector<8x1xf32>
    %138 = arith.cmpf olt, %136, %137 : vector<8x1xf32>
    %cst_83 = arith.constant 0.353553385 : f32
    %139 = vector.broadcast %cst_83 : f32 to vector<8x8xf32>
    %140 = arith.mulf %110, %139 : vector<8x8xf32>
    %cst_84 = arith.constant dense<0xFF800000> : vector<8xf32>
    %141 = vector.multi_reduction <maximumf>, %140, %cst_84 [1] : vector<8x8xf32> to vector<8xf32>
    %142 = vector.shape_cast %141 : vector<8xf32> to vector<8x1xf32>
    %143 = vector.broadcast %142 : vector<8x1xf32> to vector<8x8xf32>
    %144 = arith.subf %140, %143 : vector<8x8xf32>
    %145 = math.exp %144 : vector<8x8xf32>
    %cst_85 = arith.constant dense<0.000000e+00> : vector<8xf32>
    %146 = vector.multi_reduction <add>, %145, %cst_85 [1] : vector<8x8xf32> to vector<8xf32>
    %147 = vector.shape_cast %146 : vector<8xf32> to vector<8x1xf32>
    %148 = vector.broadcast %147 : vector<8x1xf32> to vector<8x8xf32>
    %149 = arith.divf %145, %148 : vector<8x8xf32>
    %cst_86 = arith.constant 1.250000e-01 : f32
    %150 = vector.broadcast %cst_86 : f32 to vector<8x8xf32>
    %151 = arith.cmpf oge, %149, %150 : vector<8x8xf32>
    %152 = vector.broadcast %138 : vector<8x1xi1> to vector<8x8xi1>
    %153 = arith.andi %152, %151 : vector<8x8xi1>
    %cst_87 = arith.constant 0.000000e+00 : f32
    %154 = vector.broadcast %cst_87 : f32 to vector<8x8xf32>
    %155 = arith.select %153, %149, %154 : vector<8x8xi1>, vector<8x8xf32>
    %156 = arith.addf %95, %155 : vector<8x8xf32>
    %c2_88 = arith.constant 2 : index
    %c0_89 = arith.constant 0 : index
    %c0_90 = arith.constant 0 : index
    %157 = vector.load %arg10[%c2_88, %c0_89, %c0_90] : memref<4x16x8xf32, #tpu.memory_space<vmem>>, vector<1x16x8xf32>
    %158 = vector.shape_cast %157 : vector<1x16x8xf32> to vector<16x8xf32>
    %cst_91 = arith.constant dense<0.000000e+00> : vector<8x8xf32>
    %159 = tpu.matmul %85, %158, %cst_91 {dimension_numbers = #tpu.dot_dimension_numbers<[1], [0], [0], [1], [0, 0, 1, 1], [], []>} : vector<8x16xf32>, vector<16x8xf32>, vector<8x8xf32> -> vector<8x8xf32>
    %c2_92 = arith.constant 2 : index
    %c0_93 = arith.constant 0 : index
    %c0_94 = arith.constant 0 : index
    %160 = vector.load %arg11[%c2_92, %c0_93, %c0_94] : memref<4x1x8xf32, #tpu.memory_space<vmem>>, vector<1x1x8xf32>
    %161 = vector.shape_cast %160 : vector<1x1x8xf32> to vector<1x8xf32>
    %162 = vector.broadcast %161 : vector<1x8xf32> to vector<8x8xf32>
    %163 = arith.addf %159, %162 : vector<8x8xf32>
    %c3 = arith.constant 3 : index
    %c0_95 = arith.constant 0 : index
    %c0_96 = arith.constant 0 : index
    %164 = vector.load %arg10[%c3, %c0_95, %c0_96] : memref<4x16x8xf32, #tpu.memory_space<vmem>>, vector<1x16x8xf32>
    %165 = vector.shape_cast %164 : vector<1x16x8xf32> to vector<16x8xf32>
    %cst_97 = arith.constant dense<0.000000e+00> : vector<8x8xf32>
    %166 = tpu.matmul %85, %165, %cst_97 {dimension_numbers = #tpu.dot_dimension_numbers<[1], [0], [0], [1], [0, 0, 1, 1], [], []>} : vector<8x16xf32>, vector<16x8xf32>, vector<8x8xf32> -> vector<8x8xf32>
    %c3_98 = arith.constant 3 : index
    %c0_99 = arith.constant 0 : index
    %c0_100 = arith.constant 0 : index
    %167 = vector.load %arg11[%c3_98, %c0_99, %c0_100] : memref<4x1x8xf32, #tpu.memory_space<vmem>>, vector<1x1x8xf32>
    %168 = vector.shape_cast %167 : vector<1x1x8xf32> to vector<1x8xf32>
    %169 = vector.broadcast %168 : vector<1x8xf32> to vector<8x8xf32>
    %170 = arith.addf %166, %169 : vector<8x8xf32>
    %cst_101 = arith.constant dense<0.000000e+00> : vector<8x8xf32>
    %171 = tpu.matmul %163, %170, %cst_101 {dimension_numbers = #tpu.dot_dimension_numbers<[1], [1], [0], [0], [0, 0, 1, 0], [], []>} : vector<8x8xf32>, vector<8x8xf32>, vector<8x8xf32> -> vector<8x8xf32>
    %172 = arith.mulf %171, %92 : vector<8x8xf32>
    %cst_102 = arith.constant dense<0.000000e+00> : vector<8xf32>
    %173 = vector.multi_reduction <add>, %172, %cst_102 [1] : vector<8x8xf32> to vector<8xf32>
    %174 = vector.shape_cast %173 : vector<8xf32> to vector<8x1xf32>
    %cst_103 = arith.constant -1.000000e+30 : f32
    %175 = vector.broadcast %cst_103 : f32 to vector<8x8xf32>
    %176 = arith.select %94, %171, %175 : vector<8x8xi1>, vector<8x8xf32>
    %cst_104 = arith.constant dense<0xFF800000> : vector<8xf32>
    %177 = vector.multi_reduction <maximumf>, %176, %cst_104 [1] : vector<8x8xf32> to vector<8xf32>
    %178 = vector.shape_cast %177 : vector<8xf32> to vector<8x1xf32>
    %cst_105 = arith.constant 1.250000e-01 : f32
    %179 = vector.broadcast %cst_105 : f32 to vector<8x1xf32>
    %180 = arith.mulf %174, %179 : vector<8x1xf32>
    %181 = arith.subf %178, %180 : vector<8x1xf32>
    %182 = vector.broadcast %181 : vector<8x1xf32> to vector<8x8xf32>
    %183 = arith.mulf %182, %90 : vector<8x8xf32>
    %cst_106 = arith.constant dense<0.000000e+00> : vector<8xf32>
    %184 = vector.multi_reduction <add>, %183, %cst_106 [0] : vector<8x8xf32> to vector<8xf32>
    %185 = vector.shape_cast %184 : vector<8xf32> to vector<1x8xf32>
    %186 = vector.broadcast %185 : vector<1x8xf32> to vector<8x8xf32>
    %187 = vector.broadcast %181 : vector<8x1xf32> to vector<8x8xf32>
    %188 = arith.cmpf ogt, %186, %187 : vector<8x8xf32>
    %189 = vector.broadcast %185 : vector<1x8xf32> to vector<8x8xf32>
    %190 = vector.broadcast %181 : vector<8x1xf32> to vector<8x8xf32>
    %191 = arith.cmpf oeq, %189, %190 : vector<8x8xf32>
    %192 = arith.andi %191, %91 : vector<8x8xi1>
    %193 = arith.ori %188, %192 : vector<8x8xi1>
    %194 = arith.extui %193 : vector<8x8xi1> to vector<8x8xi32>
    %195 = arith.sitofp %194 : vector<8x8xi32> to vector<8x8xf32>
    %cst_107 = arith.constant dense<0.000000e+00> : vector<8xf32>
    %196 = vector.multi_reduction <add>, %195, %cst_107 [1] : vector<8x8xf32> to vector<8xf32>
    %197 = vector.shape_cast %196 : vector<8xf32> to vector<8x1xf32>
    %cst_108 = arith.constant 3.000000e+00 : f32
    %198 = vector.broadcast %cst_108 : f32 to vector<8x1xf32>
    %199 = arith.cmpf olt, %197, %198 : vector<8x1xf32>
    %cst_109 = arith.constant 0.353553385 : f32
    %200 = vector.broadcast %cst_109 : f32 to vector<8x8xf32>
    %201 = arith.mulf %171, %200 : vector<8x8xf32>
    %cst_110 = arith.constant dense<0xFF800000> : vector<8xf32>
    %202 = vector.multi_reduction <maximumf>, %201, %cst_110 [1] : vector<8x8xf32> to vector<8xf32>
    %203 = vector.shape_cast %202 : vector<8xf32> to vector<8x1xf32>
    %204 = vector.broadcast %203 : vector<8x1xf32> to vector<8x8xf32>
    %205 = arith.subf %201, %204 : vector<8x8xf32>
    %206 = math.exp %205 : vector<8x8xf32>
    %cst_111 = arith.constant dense<0.000000e+00> : vector<8xf32>
    %207 = vector.multi_reduction <add>, %206, %cst_111 [1] : vector<8x8xf32> to vector<8xf32>
    %208 = vector.shape_cast %207 : vector<8xf32> to vector<8x1xf32>
    %209 = vector.broadcast %208 : vector<8x1xf32> to vector<8x8xf32>
    %210 = arith.divf %206, %209 : vector<8x8xf32>
    %cst_112 = arith.constant 1.250000e-01 : f32
    %211 = vector.broadcast %cst_112 : f32 to vector<8x8xf32>
    %212 = arith.cmpf oge, %210, %211 : vector<8x8xf32>
    %213 = vector.broadcast %199 : vector<8x1xi1> to vector<8x8xi1>
    %214 = arith.andi %213, %212 : vector<8x8xi1>
    %cst_113 = arith.constant 0.000000e+00 : f32
    %215 = vector.broadcast %cst_113 : f32 to vector<8x8xf32>
    %216 = arith.select %214, %210, %215 : vector<8x8xi1>, vector<8x8xf32>
    %217 = arith.addf %156, %216 : vector<8x8xf32>
    %cst_114 = arith.constant 5.000000e-01 : f32
    %218 = vector.broadcast %cst_114 : f32 to vector<8x8xf32>
    %219 = arith.mulf %217, %218 : vector<8x8xf32>
    %c0_115 = arith.constant 0 : index
    %c0_116 = arith.constant 0 : index
    %c0_117 = arith.constant 0 : index
    %220 = vector.load %arg13[%c0_115, %c0_116, %c0_117] : memref<1x8x8xf32, #tpu.memory_space<vmem>>, vector<1x8x8xf32>
    %221 = vector.shape_cast %220 : vector<1x8x8xf32> to vector<8x8xf32>
    %222 = vector.shape_cast %219 : vector<8x8xf32> to vector<1x8x8xf32>
    tpu.vector_store %arg13[%c0_115, %c0_116, %c0_117], %222 {strides = array<i32>} : memref<1x8x8xf32, #tpu.memory_space<vmem>>, vector<1x8x8xf32>,
    return
  }
  func.func @transform_0(%arg0: i32) -> (i32, i32, i32) {
    %c0_i32 = arith.constant 0 : i32
    %c0_i32_0 = arith.constant 0 : i32
    %c0_i32_1 = arith.constant 0 : i32
    return %arg0, %c0_i32, %c0_i32_0 : i32, i32, i32
  }
  func.func @transform_1(%arg0: i32) -> (i32, i32) {
    %c0_i32 = arith.constant 0 : i32
    %c0_i32_0 = arith.constant 0 : i32
    %c0_i32_1 = arith.constant 0 : i32
    return %c0_i32, %c0_i32_0 : i32, i32
  }
  func.func @transform_2(%arg0: i32) -> (i32, i32, i32) {
    %c0_i32 = arith.constant 0 : i32
    %c0_i32_0 = arith.constant 0 : i32
    %c0_i32_1 = arith.constant 0 : i32
    %c0_i32_2 = arith.constant 0 : i32
    return %c0_i32, %c0_i32_0, %c0_i32_1 : i32, i32, i32
  }
  func.func @transform_3(%arg0: i32) -> (i32, i32) {
    %c0_i32 = arith.constant 0 : i32
    %c0_i32_0 = arith.constant 0 : i32
    %c0_i32_1 = arith.constant 0 : i32
    return %c0_i32, %c0_i32_0 : i32, i32
  }
  func.func @transform_4(%arg0: i32) -> (i32, i32) {
    %c0_i32 = arith.constant 0 : i32
    %c0_i32_0 = arith.constant 0 : i32
    %c0_i32_1 = arith.constant 0 : i32
    return %c0_i32, %c0_i32_0 : i32, i32
  }
  func.func @transform_5(%arg0: i32) -> (i32, i32, i32) {
    %c0_i32 = arith.constant 0 : i32
    %c0_i32_0 = arith.constant 0 : i32
    %c0_i32_1 = arith.constant 0 : i32
    %c0_i32_2 = arith.constant 0 : i32
    return %c0_i32, %c0_i32_0, %c0_i32_1 : i32, i32, i32
  }
  func.func @transform_6(%arg0: i32) -> (i32, i32) {
    %c0_i32 = arith.constant 0 : i32
    %c0_i32_0 = arith.constant 0 : i32
    %c0_i32_1 = arith.constant 0 : i32
    return %c0_i32, %c0_i32_0 : i32, i32
  }
  func.func @transform_7(%arg0: i32) -> (i32, i32) {
    %c0_i32 = arith.constant 0 : i32
    %c0_i32_0 = arith.constant 0 : i32
    %c0_i32_1 = arith.constant 0 : i32
    return %c0_i32, %c0_i32_0 : i32, i32
  }
  func.func @transform_8(%arg0: i32) -> (i32, i32, i32) {
    %c0_i32 = arith.constant 0 : i32
    %c0_i32_0 = arith.constant 0 : i32
    %c0_i32_1 = arith.constant 0 : i32
    %c0_i32_2 = arith.constant 0 : i32
    return %c0_i32, %c0_i32_0, %c0_i32_1 : i32, i32, i32
  }
  func.func @transform_9(%arg0: i32) -> (i32, i32, i32) {
    %c0_i32 = arith.constant 0 : i32
    %c0_i32_0 = arith.constant 0 : i32
    %c0_i32_1 = arith.constant 0 : i32
    %c0_i32_2 = arith.constant 0 : i32
    return %c0_i32, %c0_i32_0, %c0_i32_1 : i32, i32, i32
  }
  func.func @transform_10(%arg0: i32) -> (i32, i32, i32) {
    %c0_i32 = arith.constant 0 : i32
    %c0_i32_0 = arith.constant 0 : i32
    %c0_i32_1 = arith.constant 0 : i32
    %c0_i32_2 = arith.constant 0 : i32
    return %c0_i32, %c0_i32_0, %c0_i32_1 : i32, i32, i32
  }
  func.func @transform_11(%arg0: i32) -> (i32, i32) {
    %c0_i32 = arith.constant 0 : i32
    %c0_i32_0 = arith.constant 0 : i32
    %c0_i32_1 = arith.constant 0 : i32
    return %c0_i32, %c0_i32_0 : i32, i32
  }
  func.func @transform_12(%arg0: i32) -> (i32, i32, i32) {
    %c0_i32 = arith.constant 0 : i32
    %c0_i32_0 = arith.constant 0 : i32
    %c0_i32_1 = arith.constant 0 : i32
    return %arg0, %c0_i32, %c0_i32_0 : i32, i32, i32
  }
}

</mosaic_0001>

<llo_original>
// kernel: tile.27
$region0: #{tile.27}
  #allocation0 [shape = 's32[1]{0}', space=sflag, size = 0x4, scoped, tag = 'scoped memory for tile.27']
  %s0 = inlined_call_operand.vmem [shape: f32[15], index: 0, kind: input, shape index: {}]
  %s1 = inlined_call_operand.vmem [shape: f32[4,15], index: 1, kind: output, shape index: {}]
  // Predicated region
  $region2: #{tile.27} parent=0 // pred_check
    _
  $region3: #{tile.27} parent=0 // pred_check_branch
    %3 = sbr.rel (0) target = $region5
  $region4: #{tile.27} parent=0 // pred_region
    _
  $region5: #{tile.27} parent=0 // pred_fallthru
    _
  %v4 = vld [vmem:[%s0] ss:$0 sm:$0xff]
  %5 = vst [vmem:[%s1] sm:$0xf] %v4

// kernel: tile.29
$region0: #{tile.29}
  %s0 = inlined_call_operand.vmem [shape: f32[4,15], index: 0, kind: input, shape index: {}]
  %s1 = inlined_call_operand.vmem [shape: f32[1,60], index: 1, kind: output, shape index: {}]
  $region1: #{tile.29} parent=0
    #allocation0 [shape = 'u8[4096]{0}', space=vmem, size = 0x1000, scoped, tag = 'scoped mem for output reshape']
    #allocation1 [shape = 'u8[4096]{0}', space=vmem, size = 0x1000, scoped, tag = 'scoped mem for input reshape']
    %s3 = sshllo.u32 0, 4
    %v4 = vld [vmem:[%s0] sm:%s3]
    %5 = vst [vmem:[#allocation1] sm:%s3] %v4
    %v6 = vld [vmem:[#allocation1] sm:$0x1]
    %vm7 = vcmask 121856
    %8 = vst.msk [vmem:[#allocation0] sm:$0x1] %vm7, %v6
    %s9 = scalar_lea.vmem [#allocation1], 3
    %v10 = vld [vmem:[%s9] sm:$0x1]
    %11 = vrot.lane.b32.xlu0 %v10, 45
    %v12 = vpop.permute.xlu0 %11
    %vm13 = vcmask 490856
    %14 = vst.msk [vmem:[#allocation0] sm:$0x1] %vm13, %v12
    %s15 = scalar_lea.vmem [#allocation1], 2
    %v16 = vld [vmem:[%s15] sm:$0x1]
    %17 = vrot.lane.b32.xlu0 %v16, 30
    %v18 = vpop.permute.xlu0 %17
    %vm19 = vcmask 367856
    %20 = vst.msk [vmem:[#allocation0] sm:$0x1] %vm19, %v18
    %s21 = scalar_lea.vmem [#allocation1], 1
    %v22 = vld [vmem:[%s21] sm:$0x1]
    %23 = vrot.lane.b32.xlu0 %v22, 15
    %v24 = vpop.permute.xlu0 %23
    %vm25 = vcmask 244856
    %26 = vst.msk [vmem:[#allocation0] sm:$0x1] %vm25, %v24
    %s28 = sshllo.u32 0, 1
    %v30 = vld [vmem:[#allocation0] sm:%s28]
    %s31 = sshllo.u32 0, 1
    %32 = vst [vmem:[%s1] sm:%s31] %v30

// kernel: tile.37
$region0: #{tile.37}
  #allocation0 [shape = 's32[1]{0}', space=sflag, size = 0x4, scoped, tag = 'scoped memory for tile.37']
  %s0 = inlined_call_operand.vmem [shape: f32[7], index: 0, kind: input, shape index: {}]
  %s1 = inlined_call_operand.vmem [shape: f32[8,7], index: 1, kind: output, shape index: {}]
  // Predicated region
  $region2: #{tile.37} parent=0 // pred_check
    _
  $region3: #{tile.37} parent=0 // pred_check_branch
    %3 = sbr.rel (0) target = $region5
  $region4: #{tile.37} parent=0 // pred_region
    _
  $region5: #{tile.37} parent=0 // pred_fallthru
    _
  %v4 = vld [vmem:[%s0] ss:$0 sm:$0xff]
  %5 = vst [vmem:[%s1] sm:$0xff] %v4

// kernel: tile.39
$region0: #{tile.39}
  %s0 = inlined_call_operand.vmem [shape: f32[8,7], index: 0, kind: input, shape index: {}]
  %s1 = inlined_call_operand.vmem [shape: f32[1,56], index: 1, kind: output, shape index: {}]
  $region1: #{tile.39} parent=0
    #allocation0 [shape = 'u8[4096]{0}', space=vmem, size = 0x1000, scoped, tag = 'scoped mem for output reshape']
    %v2 = vld [vmem:[%s0] sm:$0x1]
    %vm3 = vcmask 56320
    %4 = vst.msk [vmem:[#allocation0] sm:$0x1] %vm3, %v2
    %s5 = scalar_lea.vmem %s0, 7
    %v6 = vld [vmem:[%s5] sm:$0x1]
    %7 = vrot.lane.b32.xlu0 %v6, 49
    %v8 = vpop.permute.xlu0 %7
    %vm9 = vcmask 458120
    %10 = vst.msk [vmem:[#allocation0] sm:$0x1] %vm9, %v8
    %s11 = scalar_lea.vmem %s0, 6
    %v12 = vld [vmem:[%s11] sm:$0x1]
    %13 = vrot.lane.b32.xlu0 %v12, 42
    %v14 = vpop.permute.xlu0 %13
    %vm15 = vcmask 400720
    %16 = vst.msk [vmem:[#allocation0] sm:$0x1] %vm15, %v14
    %s17 = scalar_lea.vmem %s0, 5
    %v18 = vld [vmem:[%s17] sm:$0x1]
    %19 = vrot.lane.b32.xlu0 %v18, 35
    %v20 = vpop.permute.xlu0 %19
    %vm21 = vcmask 343320
    %22 = vst.msk [vmem:[#allocation0] sm:$0x1] %vm21, %v20
    %s23 = scalar_lea.vmem %s0, 4
    %v24 = vld [vmem:[%s23] sm:$0x1]
    %25 = vrot.lane.b32.xlu0 %v24, 28
    %v26 = vpop.permute.xlu0 %25
    %vm27 = vcmask 285920
    %28 = vst.msk [vmem:[#allocation0] sm:$0x1] %vm27, %v26
    %s29 = scalar_lea.vmem %s0, 3
    %v30 = vld [vmem:[%s29] sm:$0x1]
    %31 = vrot.lane.b32.xlu0 %v30, 21
    %v32 = vpop.permute.xlu0 %31
    %vm33 = vcmask 228520
    %34 = vst.msk [vmem:[#allocation0] sm:$0x1] %vm33, %v32
    %s35 = scalar_lea.vmem %s0, 2
    %v36 = vld [vmem:[%s35] sm:$0x1]
    %37 = vrot.lane.b32.xlu0 %v36, 14
    %v38 = vpop.permute.xlu0 %37
    %vm39 = vcmask 171120
    %40 = vst.msk [vmem:[#allocation0] sm:$0x1] %vm39, %v38
    %s41 = scalar_lea.vmem %s0, 1
    %v42 = vld [vmem:[%s41] sm:$0x1]
    %43 = vrot.lane.b32.xlu0 %v42, 7
    %v44 = vpop.permute.xlu0 %43
    %vm45 = vcmask 113720
    %46 = vst.msk [vmem:[#allocation0] sm:$0x1] %vm45, %v44
    %s48 = sshllo.u32 0, 1
    %v50 = vld [vmem:[#allocation0] sm:%s48]
    %s51 = sshllo.u32 0, 1
    %52 = vst [vmem:[%s1] sm:%s51] %v50

// kernel: _lambda_.1
$region0: #{_lambda_.1}
  #allocation0 [shape = 'u32[]', space=smem, size = 0x4, offset = 0x4, fixed_abs, tag = 'smem constant byte address 0x4 - core index']
  #allocation1 [shape = 'u32[144,128]{1,0:T(1,128)}', space=vmem, size = 0x12000, scoped, tag = 'internal scratch']
  %s0 = inlined_call_operand.vmem [shape: f32[2,8,32], index: 0, kind: input, shape index: {}]
  %s1 = inlined_call_operand.vmem [shape: f32[32,60], index: 1, kind: input, shape index: {}]
  %s2 = inlined_call_operand.vmem [shape: f32[3,1,60], index: 2, kind: input, shape index: {}]
  %s3 = inlined_call_operand.vmem [shape: f32[60,60], index: 3, kind: input, shape index: {}]
  %s4 = inlined_call_operand.vmem [shape: f32[60,56], index: 4, kind: input, shape index: {}]
  %s5 = inlined_call_operand.vmem [shape: f32[3,1,56], index: 5, kind: input, shape index: {}]
  %s6 = inlined_call_operand.vmem [shape: f32[56,56], index: 6, kind: input, shape index: {}]
  %s7 = inlined_call_operand.vmem [shape: f32[56,16], index: 7, kind: input, shape index: {}]
  %s8 = inlined_call_operand.vmem [shape: f32[3,1,16], index: 8, kind: input, shape index: {}]
  %s9 = inlined_call_operand.vmem [shape: f32[4,16,8], index: 9, kind: input, shape index: {}]
  %s10 = inlined_call_operand.vmem [shape: f32[4,1,8], index: 10, kind: input, shape index: {}]
  %s11 = inlined_call_operand.hbm [shape: f32[8,8], index: 11, kind: input, shape index: {}]
  %s12 = inlined_call_operand.hbm [shape: f32[2,8,8], index: 12, kind: output, shape index: {}]
  %s13 = sld [smem:[#allocation0]]
  $region85: #{_lambda_.1} parent=0
    _
  %s15 = ssub.s32 1, %s13
  %s16 = scalar_select 0, %s15, %s13
  $region1: #{_lambda_.1} parent=0
    #allocation2 [shape = 'u8[4096]{0}', space=vmem, size = 0x1000, scoped, tag = 'input window, operand 11, single buffered']
    #allocation3 [shape = 's32[2]{0}', space=sflag, size = 0x8, scoped, tag = 'scoped memory for _lambda_.1']
    #allocation4 [shape = 's32[2]{0}', space=sflag, size = 0x8, scoped, tag = 'scoped memory for _lambda_.1']
    #allocation5 [shape = 'u8[8192]{0}', space=vmem, size = 0x2000, scoped, tag = 'output window, operand 0']
    %17 = vsyncpa [#allocation3], 0
    %18 = vsyncpa [#allocation4], 0
    %s19 = scalar_lea.sflag [#allocation4], 1
    %20 = vsyncpa %s19, 0
    loop: start=0, step=1, limit=4
    $region2: #{_lambda_.1} parent=1 // loop_pre_header
      _
    $region3: #{_lambda_.1} parent=1 // loop_header
      %s22 = sphi 0, %s26
      %p23 = scmp.ge.s32.totalorder %s22, 4
      %s32 = sphi 0, %s34
      %s35 = sphi 0, %s32
      %s36 = sphi 0, %s35
      %s52 = sphi 0, %s36
      %s56 = sphi 0, %s56
      %s58 = sphi 0, %s56
      %s59 = sphi 0, %s58
      %s73 = sphi 0, %s59
      %s77 = sphi 0, %s77
      %s79 = sphi 0, %s77
      %s80 = sphi 0, %s79
      %s94 = sphi 0, %s80
      %s98 = sphi 0, %s98
      %s100 = sphi 0, %s98
      %s101 = sphi 0, %s100
      %s115 = sphi 0, %s101
      %s119 = sphi 0, %s119
      %s121 = sphi 0, %s119
      %s122 = sphi 0, %s121
      %s136 = sphi 0, %s122
      %s140 = sphi 0, %s140
      %s142 = sphi 0, %s140
      %s143 = sphi 0, %s142
      %s157 = sphi 0, %s143
      %s161 = sphi 0, %s161
      %s163 = sphi 0, %s161
      %s164 = sphi 0, %s163
      %s178 = sphi 0, %s164
      %s182 = sphi 0, %s182
      %s184 = sphi 0, %s182
      %s185 = sphi 0, %s184
      %s199 = sphi 0, %s185
      %s203 = sphi 0, %s203
      %s205 = sphi 0, %s203
      %s206 = sphi 0, %s205
      %s220 = sphi 0, %s206
      %s224 = sphi 0, %s224
      %s226 = sphi 0, %s224
      %s227 = sphi 0, %s226
      %s241 = sphi 0, %s227
      %s245 = sphi 0, %s245
      %s247 = sphi 0, %s245
      %s248 = sphi 0, %s247
      %s262 = sphi 0, %s248
      %s266 = sphi 0, %s266
      %s268 = sphi 0, %s266
      %s269 = sphi 0, %s268
      %s283 = sphi 0, %s269
      %s289 = sphi 0, %s291
      %s292 = sphi 0, %s289
      %s293 = sphi 0, %s292
      %s309 = sphi 0, %s293
    $region4: #{_lambda_.1} parent=1 // loop_header_branch
      %25 = sbr.rel (%p23) target = $region8
    $region5: #{_lambda_.1} parent=1 // loop_body
      %s27 = ssub.s32 %s22, 1
      %s28 = ssub.s32 %s22, 2
      %s29 = sadd.s32 %s22, 1
      %s30 = ssub.s32 %s22, %s29
      %p31 = scmp.eq.s32.totalorder %s30, 0
      %s33 = sadd.s32 %s32, 1
      %s34 = scalar_select %p31, %s32, %s33
      %p37 = pneg %p31
      %p38 = scmp.eq.s32.totalorder %s22, 1
      %p39 = por %p37, %p38
      %p40 = scmp.ne.s32.totalorder %s32, %s35
      %p41 = scmp.eq.s32.totalorder %s22, 0
      %p42 = por %p40, %p41
      %p43 = scmp.ne.s32.totalorder %s32, %s35
      %p44 = scmp.eq.s32.totalorder %s27, 1
      %p45 = por %p43, %p44
      %p46 = scmp.ne.s32.totalorder %s35, %s36
      %p47 = scmp.eq.s32.totalorder %s27, 0
      %p48 = por %p46, %p47
      %p49 = scmp.ne.s32.totalorder %s35, %s36
      %p50 = scmp.eq.s32.totalorder %s28, 1
      %p51 = por %p49, %p50
      %p53 = scmp.ne.s32.totalorder %s36, %s52
      %p54 = scmp.eq.s32.totalorder %s28, 0
      %p55 = por %p53, %p54
      %s57 = sadd.s32 %s56, 1
      %p60 = scmp.eq.s32.totalorder %s22, 1
      %p61 = scmp.ne.s32.totalorder %s56, %s58
      %p62 = scmp.eq.s32.totalorder %s22, 0
      %p63 = por %p61, %p62
      %p64 = scmp.ne.s32.totalorder %s56, %s58
      %p65 = scmp.eq.s32.totalorder %s27, 1
      %p66 = por %p64, %p65
      %p67 = scmp.ne.s32.totalorder %s58, %s59
      %p68 = scmp.eq.s32.totalorder %s27, 0
      %p69 = por %p67, %p68
      %p70 = scmp.ne.s32.totalorder %s58, %s59
      %p71 = scmp.eq.s32.totalorder %s28, 1
      %p72 = por %p70, %p71
      %p74 = scmp.ne.s32.totalorder %s59, %s73
      %p75 = scmp.eq.s32.totalorder %s28, 0
      %p76 = por %p74, %p75
      %s78 = sadd.s32 %s77, 1
      %p81 = scmp.eq.s32.totalorder %s22, 1
      %p82 = scmp.ne.s32.totalorder %s77, %s79
      %p83 = scmp.eq.s32.totalorder %s22, 0
      %p84 = por %p82, %p83
      %p85 = scmp.ne.s32.totalorder %s77, %s79
      %p86 = scmp.eq.s32.totalorder %s27, 1
      %p87 = por %p85, %p86
      %p88 = scmp.ne.s32.totalorder %s79, %s80
      %p89 = scmp.eq.s32.totalorder %s27, 0
      %p90 = por %p88, %p89
      %p91 = scmp.ne.s32.totalorder %s79, %s80
      %p92 = scmp.eq.s32.totalorder %s28, 1
      %p93 = por %p91, %p92
      %p95 = scmp.ne.s32.totalorder %s80, %s94
      %p96 = scmp.eq.s32.totalorder %s28, 0
      %p97 = por %p95, %p96
      %s99 = sadd.s32 %s98, 1
      %p102 = scmp.eq.s32.totalorder %s22, 1
      %p103 = scmp.ne.s32.totalorder %s98, %s100
      %p104 = scmp.eq.s32.totalorder %s22, 0
      %p105 = por %p103, %p104
      %p106 = scmp.ne.s32.totalorder %s98, %s100
      %p107 = scmp.eq.s32.totalorder %s27, 1
      %p108 = por %p106, %p107
      %p109 = scmp.ne.s32.totalorder %s100, %s101
      %p110 = scmp.eq.s32.totalorder %s27, 0
      %p111 = por %p109, %p110
      %p112 = scmp.ne.s32.totalorder %s100, %s101
      %p113 = scmp.eq.s32.totalorder %s28, 1
      %p114 = por %p112, %p113
      %p116 = scmp.ne.s32.totalorder %s101, %s115
      %p117 = scmp.eq.s32.totalorder %s28, 0
      %p118 = por %p116, %p117
      %s120 = sadd.s32 %s119, 1
      %p123 = scmp.eq.s32.totalorder %s22, 1
      %p124 = scmp.ne.s32.totalorder %s119, %s121
      %p125 = scmp.eq.s32.totalorder %s22, 0
      %p126 = por %p124, %p125
      %p127 = scmp.ne.s32.totalorder %s119, %s121
      %p128 = scmp.eq.s32.totalorder %s27, 1
      %p129 = por %p127, %p128
      %p130 = scmp.ne.s32.totalorder %s121, %s122
      %p131 = scmp.eq.s32.totalorder %s27, 0
      %p132 = por %p130, %p131
      %p133 = scmp.ne.s32.totalorder %s121, %s122
      %p134 = scmp.eq.s32.totalorder %s28, 1
      %p135 = por %p133, %p134
      %p137 = scmp.ne.s32.totalorder %s122, %s136
      %p138 = scmp.eq.s32.totalorder %s28, 0
      %p139 = por %p137, %p138
      %s141 = sadd.s32 %s140, 1
      %p144 = scmp.eq.s32.totalorder %s22, 1
      %p145 = scmp.ne.s32.totalorder %s140, %s142
      %p146 = scmp.eq.s32.totalorder %s22, 0
      %p147 = por %p145, %p146
      %p148 = scmp.ne.s32.totalorder %s140, %s142
      %p149 = scmp.eq.s32.totalorder %s27, 1
      %p150 = por %p148, %p149
      %p151 = scmp.ne.s32.totalorder %s142, %s143
      %p152 = scmp.eq.s32.totalorder %s27, 0
      %p153 = por %p151, %p152
      %p154 = scmp.ne.s32.totalorder %s142, %s143
      %p155 = scmp.eq.s32.totalorder %s28, 1
      %p156 = por %p154, %p155
      %p158 = scmp.ne.s32.totalorder %s143, %s157
      %p159 = scmp.eq.s32.totalorder %s28, 0
      %p160 = por %p158, %p159
      %s162 = sadd.s32 %s161, 1
      %p165 = scmp.eq.s32.totalorder %s22, 1
      %p166 = scmp.ne.s32.totalorder %s161, %s163
      %p167 = scmp.eq.s32.totalorder %s22, 0
      %p168 = por %p166, %p167
      %p169 = scmp.ne.s32.totalorder %s161, %s163
      %p170 = scmp.eq.s32.totalorder %s27, 1
      %p171 = por %p169, %p170
      %p172 = scmp.ne.s32.totalorder %s163, %s164
      %p173 = scmp.eq.s32.totalorder %s27, 0
      %p174 = por %p172, %p173
      %p175 = scmp.ne.s32.totalorder %s163, %s164
      %p176 = scmp.eq.s32.totalorder %s28, 1
      %p177 = por %p175, %p176
      %p179 = scmp.ne.s32.totalorder %s164, %s178
      %p180 = scmp.eq.s32.totalorder %s28, 0
      %p181 = por %p179, %p180
      %s183 = sadd.s32 %s182, 1
      %p186 = scmp.eq.s32.totalorder %s22, 1
      %p187 = scmp.ne.s32.totalorder %s182, %s184
      %p188 = scmp.eq.s32.totalorder %s22, 0
      %p189 = por %p187, %p188
      %p190 = scmp.ne.s32.totalorder %s182, %s184
      %p191 = scmp.eq.s32.totalorder %s27, 1
      %p192 = por %p190, %p191
      %p193 = scmp.ne.s32.totalorder %s184, %s185
      %p194 = scmp.eq.s32.totalorder %s27, 0
      %p195 = por %p193, %p194
      %p196 = scmp.ne.s32.totalorder %s184, %s185
      %p197 = scmp.eq.s32.totalorder %s28, 1
      %p198 = por %p196, %p197
      %p200 = scmp.ne.s32.totalorder %s185, %s199
      %p201 = scmp.eq.s32.totalorder %s28, 0
      %p202 = por %p200, %p201
      %s204 = sadd.s32 %s203, 1
      %p207 = scmp.eq.s32.totalorder %s22, 1
      %p208 = scmp.ne.s32.totalorder %s203, %s205
      %p209 = scmp.eq.s32.totalorder %s22, 0
      %p210 = por %p208, %p209
      %p211 = scmp.ne.s32.totalorder %s203, %s205
      %p212 = scmp.eq.s32.totalorder %s27, 1
      %p213 = por %p211, %p212
      %p214 = scmp.ne.s32.totalorder %s205, %s206
      %p215 = scmp.eq.s32.totalorder %s27, 0
      %p216 = por %p214, %p215
      %p217 = scmp.ne.s32.totalorder %s205, %s206
      %p218 = scmp.eq.s32.totalorder %s28, 1
      %p219 = por %p217, %p218
      %p221 = scmp.ne.s32.totalorder %s206, %s220
      %p222 = scmp.eq.s32.totalorder %s28, 0
      %p223 = por %p221, %p222
      %s225 = sadd.s32 %s224, 1
      %p228 = scmp.eq.s32.totalorder %s22, 1
      %p229 = scmp.ne.s32.totalorder %s224, %s226
      %p230 = scmp.eq.s32.totalorder %s22, 0
      %p231 = por %p229, %p230
      %p232 = scmp.ne.s32.totalorder %s224, %s226
      %p233 = scmp.eq.s32.totalorder %s27, 1
      %p234 = por %p232, %p233
      %p235 = scmp.ne.s32.totalorder %s226, %s227
      %p236 = scmp.eq.s32.totalorder %s27, 0
      %p237 = por %p235, %p236
      %p238 = scmp.ne.s32.totalorder %s226, %s227
      %p239 = scmp.eq.s32.totalorder %s28, 1
      %p240 = por %p238, %p239
      %p242 = scmp.ne.s32.totalorder %s227, %s241
      %p243 = scmp.eq.s32.totalorder %s28, 0
      %p244 = por %p242, %p243
      %s246 = sadd.s32 %s245, 1
      %p249 = scmp.eq.s32.totalorder %s22, 1
      %p250 = scmp.ne.s32.totalorder %s245, %s247
      %p251 = scmp.eq.s32.totalorder %s22, 0
      %p252 = por %p250, %p251
      %p253 = scmp.ne.s32.totalorder %s245, %s247
      %p254 = scmp.eq.s32.totalorder %s27, 1
      %p255 = por %p253, %p254
      %p256 = scmp.ne.s32.totalorder %s247, %s248
      %p257 = scmp.eq.s32.totalorder %s27, 0
      %p258 = por %p256, %p257
      %p259 = scmp.ne.s32.totalorder %s247, %s248
      %p260 = scmp.eq.s32.totalorder %s28, 1
      %p261 = por %p259, %p260
      %p263 = scmp.ne.s32.totalorder %s248, %s262
      %p264 = scmp.eq.s32.totalorder %s28, 0
      %p265 = por %p263, %p264
      %s267 = sadd.s32 %s266, 1
      %p270 = scmp.eq.s32.totalorder %s22, 1
      %p271 = scmp.ne.s32.totalorder %s266, %s268
      %p272 = scmp.eq.s32.totalorder %s22, 0
      %p273 = por %p271, %p272
      %p274 = scmp.ne.s32.totalorder %s266, %s268
      %p275 = scmp.eq.s32.totalorder %s27, 1
      %p276 = por %p274, %p275
      %p277 = scmp.ne.s32.totalorder %s268, %s269
      %p278 = scmp.eq.s32.totalorder %s27, 0
      %p279 = por %p277, %p278
      %p280 = scmp.ne.s32.totalorder %s268, %s269
      %p281 = scmp.eq.s32.totalorder %s28, 1
      %p282 = por %p280, %p281
      %p284 = scmp.ne.s32.totalorder %s269, %s283
      %p285 = scmp.eq.s32.totalorder %s28, 0
      %p286 = por %p284, %p285
      %s287 = ssub.s32 %s22, %s29
      %p288 = scmp.eq.s32.totalorder %s287, 0
      %s290 = sadd.s32 %s289, 1
      %s291 = scalar_select %p288, %s289, %s290
      %p294 = pneg %p288
      %p295 = scmp.eq.s32.totalorder %s22, 1
      %p296 = por %p294, %p295
      %p297 = scmp.ne.s32.totalorder %s289, %s292
      %p298 = scmp.eq.s32.totalorder %s22, 0
      %p299 = por %p297, %p298
      %p300 = scmp.ne.s32.totalorder %s289, %s292
      %p301 = scmp.eq.s32.totalorder %s27, 1
      %p302 = por %p300, %p301
      %p303 = scmp.ne.s32.totalorder %s292, %s293
      %p304 = scmp.eq.s32.totalorder %s27, 0
      %p305 = por %p303, %p304
      %p306 = scmp.ne.s32.totalorder %s292, %s293
      %p307 = scmp.eq.s32.totalorder %s28, 1
      %p308 = por %p306, %p307
      %p310 = scmp.ne.s32.totalorder %s293, %s309
      %p311 = scmp.eq.s32.totalorder %s28, 0
      %p312 = por %p310, %p311
      %p313 = scmp.le.s32.totalorder 1, %s22
      %p314 = scmp.lt.s32.totalorder %s22, 3
      %p315 = pnand %p313, %p314
      %p316 = pneg %p315
      // Predicated region
      $region9: #{_lambda_.1} parent=5 // pred_check
        _
      $region10: #{_lambda_.1} parent=5 // pred_check_branch
        %318 = sbr.rel (%p315) target = $region12
      $region11: #{_lambda_.1} parent=5 // pred_region
        %s319 = ssub.s32 %s22, 1
        // Predicated region
        $region13: #{_lambda_.1} parent=11 // pred_check
          %p320 = pneg %p69
        $region14: #{_lambda_.1} parent=11 // pred_check_branch
          %322 = sbr.rel (%p320) target = $region16
        $region15: #{_lambda_.1} parent=11 // pred_region
          _
        $region16: #{_lambda_.1} parent=11 // pred_fallthru
          _
        // Predicated region
        $region17: #{_lambda_.1} parent=11 // pred_check
          %p323 = pneg %p90
        $region18: #{_lambda_.1} parent=11 // pred_check_branch
          %325 = sbr.rel (%p323) target = $region20
        $region19: #{_lambda_.1} parent=11 // pred_region
          _
        $region20: #{_lambda_.1} parent=11 // pred_fallthru
          _
        // Predicated region
        $region21: #{_lambda_.1} parent=11 // pred_check
          %p326 = pneg %p111
        $region22: #{_lambda_.1} parent=11 // pred_check_branch
          %328 = sbr.rel (%p326) target = $region24
        $region23: #{_lambda_.1} parent=11 // pred_region
          _
        $region24: #{_lambda_.1} parent=11 // pred_fallthru
          _
        // Predicated region
        $region25: #{_lambda_.1} parent=11 // pred_check
          %p329 = pneg %p132
        $region26: #{_lambda_.1} parent=11 // pred_check_branch
          %331 = sbr.rel (%p329) target = $region28
        $region27: #{_lambda_.1} parent=11 // pred_region
          _
        $region28: #{_lambda_.1} parent=11 // pred_fallthru
          _
        // Predicated region
        $region29: #{_lambda_.1} parent=11 // pred_check
          %p332 = pneg %p153
        $region30: #{_lambda_.1} parent=11 // pred_check_branch
          %334 = sbr.rel (%p332) target = $region32
        $region31: #{_lambda_.1} parent=11 // pred_region
          _
        $region32: #{_lambda_.1} parent=11 // pred_fallthru
          _
        // Predicated region
        $region33: #{_lambda_.1} parent=11 // pred_check
          %p335 = pneg %p174
        $region34: #{_lambda_.1} parent=11 // pred_check_branch
          %337 = sbr.rel (%p335) target = $region36
        $region35: #{_lambda_.1} parent=11 // pred_region
          _
        $region36: #{_lambda_.1} parent=11 // pred_fallthru
          _
        // Predicated region
        $region37: #{_lambda_.1} parent=11 // pred_check
          %p338 = pneg %p195
        $region38: #{_lambda_.1} parent=11 // pred_check_branch
          %340 = sbr.rel (%p338) target = $region40
        $region39: #{_lambda_.1} parent=11 // pred_region
          _
        $region40: #{_lambda_.1} parent=11 // pred_fallthru
          _
        // Predicated region
        $region41: #{_lambda_.1} parent=11 // pred_check
          %p341 = pneg %p216
        $region42: #{_lambda_.1} parent=11 // pred_check_branch
          %343 = sbr.rel (%p341) target = $region44
        $region43: #{_lambda_.1} parent=11 // pred_region
          _
        $region44: #{_lambda_.1} parent=11 // pred_fallthru
          _
        // Predicated region
        $region45: #{_lambda_.1} parent=11 // pred_check
          %p344 = pneg %p237
        $region46: #{_lambda_.1} parent=11 // pred_check_branch
          %346 = sbr.rel (%p344) target = $region48
        $region47: #{_lambda_.1} parent=11 // pred_region
          _
        $region48: #{_lambda_.1} parent=11 // pred_fallthru
          _
        // Predicated region
        $region49: #{_lambda_.1} parent=11 // pred_check
          %p347 = pneg %p258
        $region50: #{_lambda_.1} parent=11 // pred_check_branch
          %349 = sbr.rel (%p347) target = $region52
        $region51: #{_lambda_.1} parent=11 // pred_region
          _
        $region52: #{_lambda_.1} parent=11 // pred_fallthru
          _
        // Predicated region
        $region53: #{_lambda_.1} parent=11 // pred_check
          %p350 = pneg %p279
        $region54: #{_lambda_.1} parent=11 // pred_check_branch
          %352 = sbr.rel (%p350) target = $region56
        $region55: #{_lambda_.1} parent=11 // pred_region
          %s354 = ssub.s32 128, 128
          %355 = vsyncadd [#allocation3], %s354
          %s357 = sshll.u32 [#allocation2], 4
          %s358 = int_to_ptr.vmem [resolvable:$true] %s357
          %360 = dma.hbm_to_vmem [thread:$0]  %s11, 128, %s358, [#allocation3]
        $region56: #{_lambda_.1} parent=11 // pred_fallthru
          _
      $region12: #{_lambda_.1} parent=5 // pred_fallthru
        _
      %p361 = scmp.lt.s32.totalorder %s22, 2
      // Predicated region
      $region57: #{_lambda_.1} parent=5 // pred_check
        %p362 = pneg %p361
      $region58: #{_lambda_.1} parent=5 // pred_check_branch
        %364 = sbr.rel (%p362) target = $region60
      $region59: #{_lambda_.1} parent=5 // pred_region
        // Predicated region
        $region61: #{_lambda_.1} parent=59 // pred_check
          %p365 = pneg %p42
        $region62: #{_lambda_.1} parent=59 // pred_check_branch
          %367 = sbr.rel (%p365) target = $region64
        $region63: #{_lambda_.1} parent=59 // pred_region
          %p368 = scmp.lt.s32.totalorder %s22, 1
          %s369 = scalar_select %p368, %s22, 1
          %s370 = smul.addr %s369, 8
          %s371 = scalar_lea.vmem %s0, %s370
        $region64: #{_lambda_.1} parent=59 // pred_fallthru
          _
      $region60: #{_lambda_.1} parent=5 // pred_fallthru
        _
      %p372 = scmp.le.s32.totalorder 1, %s22
      %p373 = scmp.lt.s32.totalorder %s22, 3
      %p374 = pnand %p372, %p373
      %p375 = pneg %p374
      // Predicated region
      $region65: #{_lambda_.1} parent=5 // pred_check
        _
      $region66: #{_lambda_.1} parent=5 // pred_check_branch
        %377 = sbr.rel (%p374) target = $region68
      $region67: #{_lambda_.1} parent=5 // pred_region
        %s378 = ssub.s32 %s22, 1
        // Predicated region
        $region69: #{_lambda_.1} parent=67 // pred_check
          %p379 = pneg %p279
        $region70: #{_lambda_.1} parent=67 // pred_check_branch
          %381 = sbr.rel (%p379) target = $region72
        $region71: #{_lambda_.1} parent=67 // pred_region
          %382 = dma.done [#allocation3], 128
        $region72: #{_lambda_.1} parent=67 // pred_fallthru
          _
        %p383 = scmp.lt.s32.totalorder %s27, 1
        %s384 = scalar_select %p383, %s27, 1
        %s385 = smul.addr %s384, 8
        %s386 = scalar_lea.vmem %s0, %s385
        %p387 = pneg %p48
        %p388 = pneg %p45
        %p389 = pneg %p69
        %p390 = pneg %p66
        %p391 = pneg %p90
        %p392 = pneg %p87
        %p393 = pneg %p111
        %p394 = pneg %p108
        %p395 = pneg %p132
        %p396 = pneg %p129
        %p397 = pneg %p153
        %p398 = pneg %p150
        %p399 = pneg %p174
        %p400 = pneg %p171
        %p401 = pneg %p195
        %p402 = pneg %p192
        %p403 = pneg %p216
        %p404 = pneg %p213
        %p405 = pneg %p237
        %p406 = pneg %p234
        %p407 = pneg %p258
        %p408 = pneg %p255
        %p409 = pneg %p279
        %p410 = pneg %p276
        %p411 = pneg %p305
        %p412 = pneg %p302
        %s413 = sand.u32 %s292, 1
        %s414 = scalar_lea.sflag [#allocation4], %s413
        %s415 = sand.u32 %s292, 1
        %s416 = smul.addr %s415, 8
        %s417 = scalar_lea.vmem [#allocation5], %s416
        %p418 = scmp.lt.s32.totalorder %s27, 1
        %s419 = scalar_select %p418, %s27, 1
        %s420 = smul.addr %s419, 8
        %s421 = scalar_lea.vmem %s0, %s420
        %v422 = vld [vmem:[%s421] sm:$0xff]
        %v423 = vld [vmem:[%s1] sm:$0xff]
        %v424 = vld [vmem:[%s1 + $0x8] sm:$0xff]
        %v425 = vld [vmem:[%s1 + $0x10] sm:$0xff]
        %v426 = vld [vmem:[%s1 + $0x18] sm:$0xff]
        %v427 = vld [vmem:[%s2] sm:$0x1]
        %v429 = vlaneseq
        %v430 = vshrl.u32 %v429, 7
        %v431 = vsub.s32 0, %v430
        %v432 = vrot.slane %v427, %v431
        %vm434 = vcmask 261120
        %v436 = vsel %vm434, %v422, 0
        %438 = vmatprep.subr.mxu0 0.0
        %439 = vmatpush1.msra.mxu0 %v423
        %440 = vmatprep.subr.mxu0 0.0
        %441 = vmatpush1.msra.mxu0 %v424
        %442 = vmatprep.subr.mxu0 0.0
        %443 = vmatpush1.msra.mxu0 %v425
        %444 = vmatprep.subr.mxu0 0.0
        %445 = vmatpush1.msra.mxu0 %v426
        %446 = vmatprep.subr.mxu0 0.0
        %447 = vmatpush1.msra.mxu0 0.0
        %448 = vmatprep.subr.mxu0 0.0
        %449 = vmatpush1.msra.mxu0 0.0
        %450 = vmatprep.subr.mxu0 0.0
        %451 = vmatpush1.msra.mxu0 0.0
        %452 = vmatprep.subr.mxu0 0.0
        %453 = vmatpush1.msra.mxu0 0.0
        %454 = vmatprep.subr.mxu0 0.0
        %455 = vmatpush1.msra.mxu0 0.0
        %456 = vmatprep.subr.mxu0 0.0
        %457 = vmatpush1.msra.mxu0 0.0
        %458 = vmatprep.subr.mxu0 0.0
        %459 = vmatpush1.msra.mxu0 0.0
        %460 = vmatprep.subr.mxu0 0.0
        %461 = vmatpush1.msra.mxu0 0.0
        %462 = vmatprep.subr.mxu0 0.0
        %463 = vmatpush1.msra.mxu0 0.0
        %464 = vmatprep.subr.mxu0 0.0
        %465 = vmatpush1.msra.mxu0 0.0
        %466 = vmatprep.subr.mxu0 0.0
        %467 = vmatpush1.msra.mxu0 0.0
        %468 = vmatprep.subr.mxu0 0.0
        %469 = vmatpush1.msra.mxu0 0.0
        %470 = vmatprep.subr.mxu0 0.0
        %471 = vmatpush1.msra.mxu0 0.0
        %472 = vmatprep.subr.mxu0 0.0
        %473 = vmatpush1.msra.mxu0 0.0
        %474 = vmatprep.subr.mxu0 0.0
        %475 = vmatpush1.msra.mxu0 0.0
        %476 = vmatprep.subr.mxu0 0.0
        %477 = vmatpush1.msra.mxu0 0.0
        %478 = vmatprep.subr.mxu0 0.0
        %479 = vmatpush1.msra.mxu0 0.0
        %480 = vmatprep.subr.mxu0 0.0
        %481 = vmatpush1.msra.mxu0 0.0
        %482 = vmatprep.subr.mxu0 0.0
        %483 = vmatpush1.msra.mxu0 0.0
        %484 = vmatprep.subr.mxu0 0.0
        %485 = vmatpush1.msra.mxu0 0.0
        %486 = vmatprep.subr.mxu0 0.0
        %487 = vmatpush1.msra.mxu0 0.0
        %488 = vmatprep.subr.mxu0 0.0
        %489 = vmatpush1.msra.mxu0 0.0
        %490 = vmatprep.subr.mxu0 0.0
        %491 = vmatpush1.msra.mxu0 0.0
        %492 = vmatprep.subr.mxu0 0.0
        %493 = vmatpush1.msra.mxu0 0.0
        %494 = vmatprep.subr.mxu0 0.0
        %495 = vmatpush1.msra.mxu0 0.0
        %496 = vmatprep.subr.mxu0 0.0
        %497 = vmatpush1.msra.mxu0 0.0
        %498 = vmatprep.subr.mxu0 0.0
        %499 = vmatpush1.msra.mxu0 0.0
        %500 = vmatprep.subr.mxu0 0.0
        %501 = vmatpush1.msra.mxu0 0.0
        %502 = vmatprep.mubr.f32.mxu0 0.0
        %503 = vmatmul.mubr.f32.gmra.mrb[0].mxu0 %v436
        %v504 = vpop.f32.mrb[0].mxu0
        %v505 = vadd.f32 %v432, %v504
        %v506 = vpop.f32.mrb[0].mxu0
        %507 = vdwg.mxu0
        %v508 = vmax.f32 %v505, 0.0
        %v509 = vld [vmem:[%s3] sm:$0xff]
        %v510 = vld [vmem:[%s3 + $0x8] sm:$0xff]
        %v511 = vld [vmem:[%s3 + $0x10] sm:$0xff]
        %v512 = vld [vmem:[%s3 + $0x18] sm:$0xff]
        %v513 = vld [vmem:[%s3 + $0x20] sm:$0xff]
        %v514 = vld [vmem:[%s3 + $0x28] sm:$0xff]
        %v515 = vld [vmem:[%s3 + $0x30] sm:$0xff]
        %v516 = vld [vmem:[%s3 + $0x38] sm:$0xf]
        %vm517 = vcmask 490496
        %v519 = vsel %vm517, %v508, 0
        %vm521 = vcmask 1043456
        %v523 = vsel %vm521, %v516, 0
        %525 = vmatprep.subr.mxu0 0.0
        %526 = vmatpush1.msra.mxu0 %v509
        %527 = vmatprep.subr.mxu0 0.0
        %528 = vmatpush1.msra.mxu0 %v510
        %529 = vmatprep.subr.mxu0 0.0
        %530 = vmatpush1.msra.mxu0 %v511
        %531 = vmatprep.subr.mxu0 0.0
        %532 = vmatpush1.msra.mxu0 %v512
        %533 = vmatprep.subr.mxu0 0.0
        %534 = vmatpush1.msra.mxu0 %v513
        %535 = vmatprep.subr.mxu0 0.0
        %536 = vmatpush1.msra.mxu0 %v514
        %537 = vmatprep.subr.mxu0 0.0
        %538 = vmatpush1.msra.mxu0 %v515
        %539 = vmatprep.subr.mxu0 0.0
        %540 = vmatpush1.msra.mxu0 %v523
        %541 = vmatprep.subr.mxu0 0.0
        %542 = vmatpush1.msra.mxu0 0.0
        %543 = vmatprep.subr.mxu0 0.0
        %544 = vmatpush1.msra.mxu0 0.0
        %545 = vmatprep.subr.mxu0 0.0
        %546 = vmatpush1.msra.mxu0 0.0
        %547 = vmatprep.subr.mxu0 0.0
        %548 = vmatpush1.msra.mxu0 0.0
        %549 = vmatprep.subr.mxu0 0.0
        %550 = vmatpush1.msra.mxu0 0.0
        %551 = vmatprep.subr.mxu0 0.0
        %552 = vmatpush1.msra.mxu0 0.0
        %553 = vmatprep.subr.mxu0 0.0
        %554 = vmatpush1.msra.mxu0 0.0
        %555 = vmatprep.subr.mxu0 0.0
        %556 = vmatpush1.msra.mxu0 0.0
        %557 = vmatprep.subr.mxu0 0.0
        %558 = vmatpush1.msra.mxu0 0.0
        %559 = vmatprep.subr.mxu0 0.0
        %560 = vmatpush1.msra.mxu0 0.0
        %561 = vmatprep.subr.mxu0 0.0
        %562 = vmatpush1.msra.mxu0 0.0
        %563 = vmatprep.subr.mxu0 0.0
        %564 = vmatpush1.msra.mxu0 0.0
        %565 = vmatprep.subr.mxu0 0.0
        %566 = vmatpush1.msra.mxu0 0.0
        %567 = vmatprep.subr.mxu0 0.0
        %568 = vmatpush1.msra.mxu0 0.0
        %569 = vmatprep.subr.mxu0 0.0
        %570 = vmatpush1.msra.mxu0 0.0
        %571 = vmatprep.subr.mxu0 0.0
        %572 = vmatpush1.msra.mxu0 0.0
        %573 = vmatprep.subr.mxu0 0.0
        %574 = vmatpush1.msra.mxu0 0.0
        %575 = vmatprep.subr.mxu0 0.0
        %576 = vmatpush1.msra.mxu0 0.0
        %577 = vmatprep.subr.mxu0 0.0
        %578 = vmatpush1.msra.mxu0 0.0
        %579 = vmatprep.subr.mxu0 0.0
        %580 = vmatpush1.msra.mxu0 0.0
        %581 = vmatprep.subr.mxu0 0.0
        %582 = vmatpush1.msra.mxu0 0.0
        %583 = vmatprep.subr.mxu0 0.0
        %584 = vmatpush1.msra.mxu0 0.0
        %585 = vmatprep.subr.mxu0 0.0
        %586 = vmatpush1.msra.mxu0 0.0
        %587 = vmatprep.subr.mxu0 0.0
        %588 = vmatpush1.msra.mxu0 0.0
        %589 = vmatprep.mubr.f32.mxu0 0.0
        %590 = vmatmul.mubr.f32.gmra.mrb[0].mxu0 %v519
        %v591 = vpop.f32.mrb[0].mxu0
        %v592 = vadd.f32 0.0, %v591
        %v593 = vpop.f32.mrb[0].mxu0
        %594 = vdwg.mxu0
        %v595 = vsub.f32 %v508, %v592
        %v596 = vmul.f32 %v595, %v595
        %v598 = vsel %vm517, %v596, 0
        %600 = vmatprep.subr.mxu0 0.0
        %601 = vmatpush1.msra.mxu0 %v509
        %602 = vmatprep.subr.mxu0 0.0
        %603 = vmatpush1.msra.mxu0 %v510
        %604 = vmatprep.subr.mxu0 0.0
        %605 = vmatpush1.msra.mxu0 %v511
        %606 = vmatprep.subr.mxu0 0.0
        %607 = vmatpush1.msra.mxu0 %v512
        %608 = vmatprep.subr.mxu0 0.0
        %609 = vmatpush1.msra.mxu0 %v513
        %610 = vmatprep.subr.mxu0 0.0
        %611 = vmatpush1.msra.mxu0 %v514
        %612 = vmatprep.subr.mxu0 0.0
        %613 = vmatpush1.msra.mxu0 %v515
        %614 = vmatprep.subr.mxu0 0.0
        %615 = vmatpush1.msra.mxu0 %v523
        %616 = vmatprep.subr.mxu0 0.0
        %617 = vmatpush1.msra.mxu0 0.0
        %618 = vmatprep.subr.mxu0 0.0
        %619 = vmatpush1.msra.mxu0 0.0
        %620 = vmatprep.subr.mxu0 0.0
        %621 = vmatpush1.msra.mxu0 0.0
        %622 = vmatprep.subr.mxu0 0.0
        %623 = vmatpush1.msra.mxu0 0.0
        %624 = vmatprep.subr.mxu0 0.0
        %625 = vmatpush1.msra.mxu0 0.0
        %626 = vmatprep.subr.mxu0 0.0
        %627 = vmatpush1.msra.mxu0 0.0
        %628 = vmatprep.subr.mxu0 0.0
        %629 = vmatpush1.msra.mxu0 0.0
        %630 = vmatprep.subr.mxu0 0.0
        %631 = vmatpush1.msra.mxu0 0.0
        %632 = vmatprep.subr.mxu0 0.0
        %633 = vmatpush1.msra.mxu0 0.0
        %634 = vmatprep.subr.mxu0 0.0
        %635 = vmatpush1.msra.mxu0 0.0
        %636 = vmatprep.subr.mxu0 0.0
        %637 = vmatpush1.msra.mxu0 0.0
        %638 = vmatprep.subr.mxu0 0.0
        %639 = vmatpush1.msra.mxu0 0.0
        %640 = vmatprep.subr.mxu0 0.0
        %641 = vmatpush1.msra.mxu0 0.0
        %642 = vmatprep.subr.mxu0 0.0
        %643 = vmatpush1.msra.mxu0 0.0
        %644 = vmatprep.subr.mxu0 0.0
        %645 = vmatpush1.msra.mxu0 0.0
        %646 = vmatprep.subr.mxu0 0.0
        %647 = vmatpush1.msra.mxu0 0.0
        %648 = vmatprep.subr.mxu0 0.0
        %649 = vmatpush1.msra.mxu0 0.0
        %650 = vmatprep.subr.mxu0 0.0
        %651 = vmatpush1.msra.mxu0 0.0
        %652 = vmatprep.subr.mxu0 0.0
        %653 = vmatpush1.msra.mxu0 0.0
        %654 = vmatprep.subr.mxu0 0.0
        %655 = vmatpush1.msra.mxu0 0.0
        %656 = vmatprep.subr.mxu0 0.0
        %657 = vmatpush1.msra.mxu0 0.0
        %658 = vmatprep.subr.mxu0 0.0
        %659 = vmatpush1.msra.mxu0 0.0
        %660 = vmatprep.subr.mxu0 0.0
        %661 = vmatpush1.msra.mxu0 0.0
        %662 = vmatprep.subr.mxu0 0.0
        %663 = vmatpush1.msra.mxu0 0.0
        %664 = vmatprep.mubr.f32.mxu0 0.0
        %665 = vmatmul.mubr.f32.gmra.mrb[0].mxu0 %v598
        %v666 = vpop.f32.mrb[0].mxu0
        %v667 = vadd.f32 1e-05, %v666
        %v668 = vpop.f32.mrb[0].mxu0
        %669 = vdwg.mxu0
        %v670 = vrsqrt.pop %v667
        %v671 = vmul.f32 %v595, %v670
        %s672 = scalar_lea.vmem %s2, 1
        %v673 = vld [vmem:[%s672] sm:$0x1]
        %v675 = vlaneseq
        %v676 = vshrl.u32 %v675, 7
        %v677 = vsub.s32 0, %v676
        %v678 = vrot.slane %v673, %v677
        %v680 = vmul.f32 %v671, %v678
        %s681 = scalar_lea.vmem %s2, 2
        %v682 = vld [vmem:[%s681] sm:$0x1]
        %v684 = vlaneseq
        %v685 = vshrl.u32 %v684, 7
        %v686 = vsub.s32 0, %v685
        %v687 = vrot.slane %v682, %v686
        %v689 = vadd.f32 %v680, %v687
        %v690 = vld [vmem:[%s4] sm:$0xff]
        %v691 = vld [vmem:[%s4 + $0x8] sm:$0xff]
        %v692 = vld [vmem:[%s4 + $0x10] sm:$0xff]
        %v693 = vld [vmem:[%s4 + $0x18] sm:$0xff]
        %v694 = vld [vmem:[%s4 + $0x20] sm:$0xff]
        %v695 = vld [vmem:[%s4 + $0x28] sm:$0xff]
        %v696 = vld [vmem:[%s4 + $0x30] sm:$0xff]
        %v697 = vld [vmem:[%s4 + $0x38] sm:$0xf]
        %v698 = vld [vmem:[%s5] sm:$0x1]
        %v700 = vlaneseq
        %v701 = vshrl.u32 %v700, 7
        %v702 = vsub.s32 0, %v701
        %v703 = vrot.slane %v698, %v702
        %v706 = vsel %vm517, %v689, 0
        %v709 = vsel %vm521, %v697, 0
        %711 = vmatprep.subr.mxu0 0.0
        %712 = vmatpush1.msra.mxu0 %v690
        %713 = vmatprep.subr.mxu0 0.0
        %714 = vmatpush1.msra.mxu0 %v691
        %715 = vmatprep.subr.mxu0 0.0
        %716 = vmatpush1.msra.mxu0 %v692
        %717 = vmatprep.subr.mxu0 0.0
        %718 = vmatpush1.msra.mxu0 %v693
        %719 = vmatprep.subr.mxu0 0.0
        %720 = vmatpush1.msra.mxu0 %v694
        %721 = vmatprep.subr.mxu0 0.0
        %722 = vmatpush1.msra.mxu0 %v695
        %723 = vmatprep.subr.mxu0 0.0
        %724 = vmatpush1.msra.mxu0 %v696
        %725 = vmatprep.subr.mxu0 0.0
        %726 = vmatpush1.msra.mxu0 %v709
        %727 = vmatprep.subr.mxu0 0.0
        %728 = vmatpush1.msra.mxu0 0.0
        %729 = vmatprep.subr.mxu0 0.0
        %730 = vmatpush1.msra.mxu0 0.0
        %731 = vmatprep.subr.mxu0 0.0
        %732 = vmatpush1.msra.mxu0 0.0
        %733 = vmatprep.subr.mxu0 0.0
        %734 = vmatpush1.msra.mxu0 0.0
        %735 = vmatprep.subr.mxu0 0.0
        %736 = vmatpush1.msra.mxu0 0.0
        %737 = vmatprep.subr.mxu0 0.0
        %738 = vmatpush1.msra.mxu0 0.0
        %739 = vmatprep.subr.mxu0 0.0
        %740 = vmatpush1.msra.mxu0 0.0
        %741 = vmatprep.subr.mxu0 0.0
        %742 = vmatpush1.msra.mxu0 0.0
        %743 = vmatprep.subr.mxu0 0.0
        %744 = vmatpush1.msra.mxu0 0.0
        %745 = vmatprep.subr.mxu0 0.0
        %746 = vmatpush1.msra.mxu0 0.0
        %747 = vmatprep.subr.mxu0 0.0
        %748 = vmatpush1.msra.mxu0 0.0
        %749 = vmatprep.subr.mxu0 0.0
        %750 = vmatpush1.msra.mxu0 0.0
        %751 = vmatprep.subr.mxu0 0.0
        %752 = vmatpush1.msra.mxu0 0.0
        %753 = vmatprep.subr.mxu0 0.0
        %754 = vmatpush1.msra.mxu0 0.0
        %755 = vmatprep.subr.mxu0 0.0
        %756 = vmatpush1.msra.mxu0 0.0
        %757 = vmatprep.subr.mxu0 0.0
        %758 = vmatpush1.msra.mxu0 0.0
        %759 = vmatprep.subr.mxu0 0.0
        %760 = vmatpush1.msra.mxu0 0.0
        %761 = vmatprep.subr.mxu0 0.0
        %762 = vmatpush1.msra.mxu0 0.0
        %763 = vmatprep.subr.mxu0 0.0
        %764 = vmatpush1.msra.mxu0 0.0
        %765 = vmatprep.subr.mxu0 0.0
        %766 = vmatpush1.msra.mxu0 0.0
        %767 = vmatprep.subr.mxu0 0.0
        %768 = vmatpush1.msra.mxu0 0.0
        %769 = vmatprep.subr.mxu0 0.0
        %770 = vmatpush1.msra.mxu0 0.0
        %771 = vmatprep.subr.mxu0 0.0
        %772 = vmatpush1.msra.mxu0 0.0
        %773 = vmatprep.subr.mxu0 0.0
        %774 = vmatpush1.msra.mxu0 0.0
        %775 = vmatprep.mubr.f32.mxu0 0.0
        %776 = vmatmul.mubr.f32.gmra.mrb[0].mxu0 %v706
        %v777 = vpop.f32.mrb[0].mxu0
        %v778 = vadd.f32 %v703, %v777
        %v779 = vpop.f32.mrb[0].mxu0
        %780 = vdwg.mxu0
        %v781 = vmax.f32 %v778, 0.0
        %v782 = vld [vmem:[%s6] sm:$0xff]
        %v783 = vld [vmem:[%s6 + $0x8] sm:$0xff]
        %v784 = vld [vmem:[%s6 + $0x10] sm:$0xff]
        %v785 = vld [vmem:[%s6 + $0x18] sm:$0xff]
        %v786 = vld [vmem:[%s6 + $0x20] sm:$0xff]
        %v787 = vld [vmem:[%s6 + $0x28] sm:$0xff]
        %v788 = vld [vmem:[%s6 + $0x30] sm:$0xff]
        %vm789 = vcmask 457728
        %v791 = vsel %vm789, %v781, 0
        %793 = vmatprep.subr.mxu0 0.0
        %794 = vmatpush1.msra.mxu0 %v782
        %795 = vmatprep.subr.mxu0 0.0
        %796 = vmatpush1.msra.mxu0 %v783
        %797 = vmatprep.subr.mxu0 0.0
        %798 = vmatpush1.msra.mxu0 %v784
        %799 = vmatprep.subr.mxu0 0.0
        %800 = vmatpush1.msra.mxu0 %v785
        %801 = vmatprep.subr.mxu0 0.0
        %802 = vmatpush1.msra.mxu0 %v786
        %803 = vmatprep.subr.mxu0 0.0
        %804 = vmatpush1.msra.mxu0 %v787
        %805 = vmatprep.subr.mxu0 0.0
        %806 = vmatpush1.msra.mxu0 %v788
        %807 = vmatprep.subr.mxu0 0.0
        %808 = vmatpush1.msra.mxu0 0.0
        %809 = vmatprep.subr.mxu0 0.0
        %810 = vmatpush1.msra.mxu0 0.0
        %811 = vmatprep.subr.mxu0 0.0
        %812 = vmatpush1.msra.mxu0 0.0
        %813 = vmatprep.subr.mxu0 0.0
        %814 = vmatpush1.msra.mxu0 0.0
        %815 = vmatprep.subr.mxu0 0.0
        %816 = vmatpush1.msra.mxu0 0.0
        %817 = vmatprep.subr.mxu0 0.0
        %818 = vmatpush1.msra.mxu0 0.0
        %819 = vmatprep.subr.mxu0 0.0
        %820 = vmatpush1.msra.mxu0 0.0
        %821 = vmatprep.subr.mxu0 0.0
        %822 = vmatpush1.msra.mxu0 0.0
        %823 = vmatprep.subr.mxu0 0.0
        %824 = vmatpush1.msra.mxu0 0.0
        %825 = vmatprep.subr.mxu0 0.0
        %826 = vmatpush1.msra.mxu0 0.0
        %827 = vmatprep.subr.mxu0 0.0
        %828 = vmatpush1.msra.mxu0 0.0
        %829 = vmatprep.subr.mxu0 0.0
        %830 = vmatpush1.msra.mxu0 0.0
        %831 = vmatprep.subr.mxu0 0.0
        %832 = vmatpush1.msra.mxu0 0.0
        %833 = vmatprep.subr.mxu0 0.0
        %834 = vmatpush1.msra.mxu0 0.0
        %835 = vmatprep.subr.mxu0 0.0
        %836 = vmatpush1.msra.mxu0 0.0
        %837 = vmatprep.subr.mxu0 0.0
        %838 = vmatpush1.msra.mxu0 0.0
        %839 = vmatprep.subr.mxu0 0.0
        %840 = vmatpush1.msra.mxu0 0.0
        %841 = vmatprep.subr.mxu0 0.0
        %842 = vmatpush1.msra.mxu0 0.0
        %843 = vmatprep.subr.mxu0 0.0
        %844 = vmatpush1.msra.mxu0 0.0
        %845 = vmatprep.subr.mxu0 0.0
        %846 = vmatpush1.msra.mxu0 0.0
        %847 = vmatprep.subr.mxu0 0.0
        %848 = vmatpush1.msra.mxu0 0.0
        %849 = vmatprep.subr.mxu0 0.0
        %850 = vmatpush1.msra.mxu0 0.0
        %851 = vmatprep.subr.mxu0 0.0
        %852 = vmatpush1.msra.mxu0 0.0
        %853 = vmatprep.subr.mxu0 0.0
        %854 = vmatpush1.msra.mxu0 0.0
        %855 = vmatprep.subr.mxu0 0.0
        %856 = vmatpush1.msra.mxu0 0.0
        %857 = vmatprep.mubr.f32.mxu0 0.0
        %858 = vmatmul.mubr.f32.gmra.mrb[0].mxu0 %v791
        %v859 = vpop.f32.mrb[0].mxu0
        %v860 = vadd.f32 0.0, %v859
        %v861 = vpop.f32.mrb[0].mxu0
        %862 = vdwg.mxu0
        %v863 = vsub.f32 %v781, %v860
        %v864 = vmul.f32 %v863, %v863
        %v866 = vsel %vm789, %v864, 0
        %868 = vmatprep.subr.mxu0 0.0
        %869 = vmatpush1.msra.mxu0 %v782
        %870 = vmatprep.subr.mxu0 0.0
        %871 = vmatpush1.msra.mxu0 %v783
        %872 = vmatprep.subr.mxu0 0.0
        %873 = vmatpush1.msra.mxu0 %v784
        %874 = vmatprep.subr.mxu0 0.0
        %875 = vmatpush1.msra.mxu0 %v785
        %876 = vmatprep.subr.mxu0 0.0
        %877 = vmatpush1.msra.mxu0 %v786
        %878 = vmatprep.subr.mxu0 0.0
        %879 = vmatpush1.msra.mxu0 %v787
        %880 = vmatprep.subr.mxu0 0.0
        %881 = vmatpush1.msra.mxu0 %v788
        %882 = vmatprep.subr.mxu0 0.0
        %883 = vmatpush1.msra.mxu0 0.0
        %884 = vmatprep.subr.mxu0 0.0
        %885 = vmatpush1.msra.mxu0 0.0
        %886 = vmatprep.subr.mxu0 0.0
        %887 = vmatpush1.msra.mxu0 0.0
        %888 = vmatprep.subr.mxu0 0.0
        %889 = vmatpush1.msra.mxu0 0.0
        %890 = vmatprep.subr.mxu0 0.0
        %891 = vmatpush1.msra.mxu0 0.0
        %892 = vmatprep.subr.mxu0 0.0
        %893 = vmatpush1.msra.mxu0 0.0
        %894 = vmatprep.subr.mxu0 0.0
        %895 = vmatpush1.msra.mxu0 0.0
        %896 = vmatprep.subr.mxu0 0.0
        %897 = vmatpush1.msra.mxu0 0.0
        %898 = vmatprep.subr.mxu0 0.0
        %899 = vmatpush1.msra.mxu0 0.0
        %900 = vmatprep.subr.mxu0 0.0
        %901 = vmatpush1.msra.mxu0 0.0
        %902 = vmatprep.subr.mxu0 0.0
        %903 = vmatpush1.msra.mxu0 0.0
        %904 = vmatprep.subr.mxu0 0.0
        %905 = vmatpush1.msra.mxu0 0.0
        %906 = vmatprep.subr.mxu0 0.0
        %907 = vmatpush1.msra.mxu0 0.0
        %908 = vmatprep.subr.mxu0 0.0
        %909 = vmatpush1.msra.mxu0 0.0
        %910 = vmatprep.subr.mxu0 0.0
        %911 = vmatpush1.msra.mxu0 0.0
        %912 = vmatprep.subr.mxu0 0.0
        %913 = vmatpush1.msra.mxu0 0.0
        %914 = vmatprep.subr.mxu0 0.0
        %915 = vmatpush1.msra.mxu0 0.0
        %916 = vmatprep.subr.mxu0 0.0
        %917 = vmatpush1.msra.mxu0 0.0
        %918 = vmatprep.subr.mxu0 0.0
        %919 = vmatpush1.msra.mxu0 0.0
        %920 = vmatprep.subr.mxu0 0.0
        %921 = vmatpush1.msra.mxu0 0.0
        %922 = vmatprep.subr.mxu0 0.0
        %923 = vmatpush1.msra.mxu0 0.0
        %924 = vmatprep.subr.mxu0 0.0
        %925 = vmatpush1.msra.mxu0 0.0
        %926 = vmatprep.subr.mxu0 0.0
        %927 = vmatpush1.msra.mxu0 0.0
        %928 = vmatprep.subr.mxu0 0.0
        %929 = vmatpush1.msra.mxu0 0.0
        %930 = vmatprep.subr.mxu0 0.0
        %931 = vmatpush1.msra.mxu0 0.0
        %932 = vmatprep.mubr.f32.mxu0 0.0
        %933 = vmatmul.mubr.f32.gmra.mrb[0].mxu0 %v866
        %v934 = vpop.f32.mrb[0].mxu0
        %v935 = vadd.f32 1e-05, %v934
        %v936 = vpop.f32.mrb[0].mxu0
        %937 = vdwg.mxu0
        %v938 = vrsqrt.pop %v935
        %v939 = vmul.f32 %v863, %v938
        %s940 = scalar_lea.vmem %s5, 1
        %v941 = vld [vmem:[%s940] sm:$0x1]
        %v943 = vlaneseq
        %v944 = vshrl.u32 %v943, 7
        %v945 = vsub.s32 0, %v944
        %v946 = vrot.slane %v941, %v945
        %v948 = vmul.f32 %v939, %v946
        %s949 = scalar_lea.vmem %s5, 2
        %v950 = vld [vmem:[%s949] sm:$0x1]
        %v952 = vlaneseq
        %v953 = vshrl.u32 %v952, 7
        %v954 = vsub.s32 0, %v953
        %v955 = vrot.slane %v950, %v954
        %v957 = vadd.f32 %v948, %v955
        %v958 = vld [vmem:[%s7] sm:$0xff]
        %v959 = vld [vmem:[%s7 + $0x8] sm:$0xff]
        %v960 = vld [vmem:[%s7 + $0x10] sm:$0xff]
        %v961 = vld [vmem:[%s7 + $0x18] sm:$0xff]
        %v962 = vld [vmem:[%s7 + $0x20] sm:$0xff]
        %v963 = vld [vmem:[%s7 + $0x28] sm:$0xff]
        %v964 = vld [vmem:[%s7 + $0x30] sm:$0xff]
        %v965 = vld [vmem:[%s8] sm:$0x1]
        %v967 = vlaneseq
        %v968 = vshrl.u32 %v967, 7
        %v969 = vsub.s32 0, %v968
        %v970 = vrot.slane %v965, %v969
        %v973 = vsel %vm789, %v957, 0
        %975 = vmatprep.subr.mxu0 0.0
        %976 = vmatpush1.msra.mxu0 %v958
        %977 = vmatprep.subr.mxu0 0.0
        %978 = vmatpush1.msra.mxu0 %v959
        %979 = vmatprep.subr.mxu0 0.0
        %980 = vmatpush1.msra.mxu0 %v960
        %981 = vmatprep.subr.mxu0 0.0
        %982 = vmatpush1.msra.mxu0 %v961
        %983 = vmatprep.subr.mxu0 0.0
        %984 = vmatpush1.msra.mxu0 %v962
        %985 = vmatprep.subr.mxu0 0.0
        %986 = vmatpush1.msra.mxu0 %v963
        %987 = vmatprep.subr.mxu0 0.0
        %988 = vmatpush1.msra.mxu0 %v964
        %989 = vmatprep.subr.mxu0 0.0
        %990 = vmatpush1.msra.mxu0 0.0
        %991 = vmatprep.subr.mxu0 0.0
        %992 = vmatpush1.msra.mxu0 0.0
        %993 = vmatprep.subr.mxu0 0.0
        %994 = vmatpush1.msra.mxu0 0.0
        %995 = vmatprep.subr.mxu0 0.0
        %996 = vmatpush1.msra.mxu0 0.0
        %997 = vmatprep.subr.mxu0 0.0
        %998 = vmatpush1.msra.mxu0 0.0
        %999 = vmatprep.subr.mxu0 0.0
        %1000 = vmatpush1.msra.mxu0 0.0
        %1001 = vmatprep.subr.mxu0 0.0
        %1002 = vmatpush1.msra.mxu0 0.0
        %1003 = vmatprep.subr.mxu0 0.0
        %1004 = vmatpush1.msra.mxu0 0.0
        %1005 = vmatprep.subr.mxu0 0.0
        %1006 = vmatpush1.msra.mxu0 0.0
        %1007 = vmatprep.subr.mxu0 0.0
        %1008 = vmatpush1.msra.mxu0 0.0
        %1009 = vmatprep.subr.mxu0 0.0
        %1010 = vmatpush1.msra.mxu0 0.0
        %1011 = vmatprep.subr.mxu0 0.0
        %1012 = vmatpush1.msra.mxu0 0.0
        %1013 = vmatprep.subr.mxu0 0.0
        %1014 = vmatpush1.msra.mxu0 0.0
        %1015 = vmatprep.subr.mxu0 0.0
        %1016 = vmatpush1.msra.mxu0 0.0
        %1017 = vmatprep.subr.mxu0 0.0
        %1018 = vmatpush1.msra.mxu0 0.0
        %1019 = vmatprep.subr.mxu0 0.0
        %1020 = vmatpush1.msra.mxu0 0.0
        %1021 = vmatprep.subr.mxu0 0.0
        %1022 = vmatpush1.msra.mxu0 0.0
        %1023 = vmatprep.subr.mxu0 0.0
        %1024 = vmatpush1.msra.mxu0 0.0
        %1025 = vmatprep.subr.mxu0 0.0
        %1026 = vmatpush1.msra.mxu0 0.0
        %1027 = vmatprep.subr.mxu0 0.0
        %1028 = vmatpush1.msra.mxu0 0.0
        %1029 = vmatprep.subr.mxu0 0.0
        %1030 = vmatpush1.msra.mxu0 0.0
        %1031 = vmatprep.subr.mxu0 0.0
        %1032 = vmatpush1.msra.mxu0 0.0
        %1033 = vmatprep.subr.mxu0 0.0
        %1034 = vmatpush1.msra.mxu0 0.0
        %1035 = vmatprep.subr.mxu0 0.0
        %1036 = vmatpush1.msra.mxu0 0.0
        %1037 = vmatprep.subr.mxu0 0.0
        %1038 = vmatpush1.msra.mxu0 0.0
        %1039 = vmatprep.mubr.f32.mxu0 0.0
        %1040 = vmatmul.mubr.f32.gmra.mrb[0].mxu0 %v973
        %v1041 = vpop.f32.mrb[0].mxu0
        %v1042 = vadd.f32 %v970, %v1041
        %v1043 = vpop.f32.mrb[0].mxu0
        %1044 = vdwg.mxu0
        %v1045 = vmax.f32 %v1042, 0.0
        %vm1046 = vcmask 130048
        %v1047 = vsel %vm1046, %v1045, 0.0
        %1048 = vadd.xlane.f32.xlu0 %v1047
        %v1049 = vpop.xlane.xlu0 %1048
        %v1050 = vrcp.pop 16.0
        %v1051 = vmul.f32 %v1049, %v1050
        %v1052 = vsub.f32 %v1045, %v1051
        %v1053 = vmul.f32 %v1052, %v1052
        %v1054 = vsel %vm1046, %v1053, 0.0
        %1055 = vadd.xlane.f32.xlu0 %v1054
        %v1056 = vpop.xlane.xlu0 %1055
        %v1057 = vmul.f32 %v1056, %v1050
        %v1058 = vadd.f32 %v1057, 1e-05
        %v1059 = vrsqrt.pop %v1058
        %v1060 = vmul.f32 %v1052, %v1059
        %s1061 = scalar_lea.vmem %s8, 1
        %v1062 = vld [vmem:[%s1061] sm:$0x1]
        %v1064 = vlaneseq
        %v1065 = vshrl.u32 %v1064, 7
        %v1066 = vsub.s32 0, %v1065
        %v1067 = vrot.slane %v1062, %v1066
        %v1069 = vmul.f32 %v1060, %v1067
        %s1070 = scalar_lea.vmem %s8, 2
        %v1071 = vld [vmem:[%s1070] sm:$0x1]
        %v1073 = vlaneseq
        %v1074 = vshrl.u32 %v1073, 7
        %v1075 = vsub.s32 0, %v1074
        %v1076 = vrot.slane %v1071, %v1075
        %v1078 = vadd.f32 %v1069, %v1076
        %v1079 = vlaneseq
        %v1080 = vshrl.u32 %v1079, 7
        %v1081 = vlaneseq
        %v1082 = vand.u32 %v1081, 127
        %vm1083 = vcmp.eq.s32.totalorder %v1080, %v1082
        %v1084 = vsel %vm1083, 1, 0
        %v1085 = vcvt.s32.f32 %v1084
        %vm1086 = vcmp.lt.s32.totalorder %v1082, %v1080
        %v1087 = vld [vmem:[#allocation2] sm:$0xff]
        %vm1088 = vcmp.gt.f32.partialorder %v1087, 0.0
        %v1089 = vld [vmem:[%s9] sm:$0xff]
        %v1090 = vld [vmem:[%s9 + $0x8] sm:$0xff]
        %v1091 = vld [vmem:[%s10] sm:$0x1]
        %v1093 = vlaneseq
        %v1094 = vshrl.u32 %v1093, 7
        %v1095 = vsub.s32 0, %v1094
        %v1096 = vrot.slane %v1091, %v1095
        %v1099 = vsel %vm1046, %v1078, 0
        %1101 = vmatprep.subr.mxu0 0.0
        %1102 = vmatpush1.msra.mxu0 %v1089
        %1103 = vmatprep.subr.mxu0 0.0
        %1104 = vmatpush1.msra.mxu0 %v1090
        %1105 = vmatprep.subr.mxu0 0.0
        %1106 = vmatpush1.msra.mxu0 0.0
        %1107 = vmatprep.subr.mxu0 0.0
        %1108 = vmatpush1.msra.mxu0 0.0
        %1109 = vmatprep.subr.mxu0 0.0
        %1110 = vmatpush1.msra.mxu0 0.0
        %1111 = vmatprep.subr.mxu0 0.0
        %1112 = vmatpush1.msra.mxu0 0.0
        %1113 = vmatprep.subr.mxu0 0.0
        %1114 = vmatpush1.msra.mxu0 0.0
        %1115 = vmatprep.subr.mxu0 0.0
        %1116 = vmatpush1.msra.mxu0 0.0
        %1117 = vmatprep.subr.mxu0 0.0
        %1118 = vmatpush1.msra.mxu0 0.0
        %1119 = vmatprep.subr.mxu0 0.0
        %1120 = vmatpush1.msra.mxu0 0.0
        %1121 = vmatprep.subr.mxu0 0.0
        %1122 = vmatpush1.msra.mxu0 0.0
        %1123 = vmatprep.subr.mxu0 0.0
        %1124 = vmatpush1.msra.mxu0 0.0
        %1125 = vmatprep.subr.mxu0 0.0
        %1126 = vmatpush1.msra.mxu0 0.0
        %1127 = vmatprep.subr.mxu0 0.0
        %1128 = vmatpush1.msra.mxu0 0.0
        %1129 = vmatprep.subr.mxu0 0.0
        %1130 = vmatpush1.msra.mxu0 0.0
        %1131 = vmatprep.subr.mxu0 0.0
        %1132 = vmatpush1.msra.mxu0 0.0
        %1133 = vmatprep.subr.mxu0 0.0
        %1134 = vmatpush1.msra.mxu0 0.0
        %1135 = vmatprep.subr.mxu0 0.0
        %1136 = vmatpush1.msra.mxu0 0.0
        %1137 = vmatprep.subr.mxu0 0.0
        %1138 = vmatpush1.msra.mxu0 0.0
        %1139 = vmatprep.subr.mxu0 0.0
        %1140 = vmatpush1.msra.mxu0 0.0
        %1141 = vmatprep.subr.mxu0 0.0
        %1142 = vmatpush1.msra.mxu0 0.0
        %1143 = vmatprep.subr.mxu0 0.0
        %1144 = vmatpush1.msra.mxu0 0.0
        %1145 = vmatprep.subr.mxu0 0.0
        %1146 = vmatpush1.msra.mxu0 0.0
        %1147 = vmatprep.subr.mxu0 0.0
        %1148 = vmatpush1.msra.mxu0 0.0
        %1149 = vmatprep.subr.mxu0 0.0
        %1150 = vmatpush1.msra.mxu0 0.0
        %1151 = vmatprep.subr.mxu0 0.0
        %1152 = vmatpush1.msra.mxu0 0.0
        %1153 = vmatprep.subr.mxu0 0.0
        %1154 = vmatpush1.msra.mxu0 0.0
        %1155 = vmatprep.subr.mxu0 0.0
        %1156 = vmatpush1.msra.mxu0 0.0
        %1157 = vmatprep.subr.mxu0 0.0
        %1158 = vmatpush1.msra.mxu0 0.0
        %1159 = vmatprep.subr.mxu0 0.0
        %1160 = vmatpush1.msra.mxu0 0.0
        %1161 = vmatprep.subr.mxu0 0.0
        %1162 = vmatpush1.msra.mxu0 0.0
        %1163 = vmatprep.subr.mxu0 0.0
        %1164 = vmatpush1.msra.mxu0 0.0
        %1165 = vmatprep.mubr.f32.mxu0 0.0
        %1166 = vmatmul.mubr.f32.gmra.mrb[0].mxu0 %v1099
        %v1167 = vpop.f32.mrb[0].mxu0
        %v1168 = vadd.f32 %v1096, %v1167
        %v1169 = vpop.f32.mrb[0].mxu0
        %1170 = vdwg.mxu0
        %s1171 = scalar_lea.vmem %s9, 16
        %v1172 = vld [vmem:[%s1171] sm:$0xff]
        %v1173 = vld [vmem:[%s1171 + $0x8] sm:$0xff]
        %s1174 = scalar_lea.vmem %s10, 1
        %v1175 = vld [vmem:[%s1174] sm:$0x1]
        %v1177 = vlaneseq
        %v1178 = vshrl.u32 %v1177, 7
        %v1179 = vsub.s32 0, %v1178
        %v1180 = vrot.slane %v1175, %v1179
        %1182 = vmatprep.subr.mxu0 0.0
        %1183 = vmatpush1.msra.mxu0 %v1172
        %1184 = vmatprep.subr.mxu0 0.0
        %1185 = vmatpush1.msra.mxu0 %v1173
        %1186 = vmatprep.subr.mxu0 0.0
        %1187 = vmatpush1.msra.mxu0 0.0
        %1188 = vmatprep.subr.mxu0 0.0
        %1189 = vmatpush1.msra.mxu0 0.0
        %1190 = vmatprep.subr.mxu0 0.0
        %1191 = vmatpush1.msra.mxu0 0.0
        %1192 = vmatprep.subr.mxu0 0.0
        %1193 = vmatpush1.msra.mxu0 0.0
        %1194 = vmatprep.subr.mxu0 0.0
        %1195 = vmatpush1.msra.mxu0 0.0
        %1196 = vmatprep.subr.mxu0 0.0
        %1197 = vmatpush1.msra.mxu0 0.0
        %1198 = vmatprep.subr.mxu0 0.0
        %1199 = vmatpush1.msra.mxu0 0.0
        %1200 = vmatprep.subr.mxu0 0.0
        %1201 = vmatpush1.msra.mxu0 0.0
        %1202 = vmatprep.subr.mxu0 0.0
        %1203 = vmatpush1.msra.mxu0 0.0
        %1204 = vmatprep.subr.mxu0 0.0
        %1205 = vmatpush1.msra.mxu0 0.0
        %1206 = vmatprep.subr.mxu0 0.0
        %1207 = vmatpush1.msra.mxu0 0.0
        %1208 = vmatprep.subr.mxu0 0.0
        %1209 = vmatpush1.msra.mxu0 0.0
        %1210 = vmatprep.subr.mxu0 0.0
        %1211 = vmatpush1.msra.mxu0 0.0
        %1212 = vmatprep.subr.mxu0 0.0
        %1213 = vmatpush1.msra.mxu0 0.0
        %1214 = vmatprep.subr.mxu0 0.0
        %1215 = vmatpush1.msra.mxu0 0.0
        %1216 = vmatprep.subr.mxu0 0.0
        %1217 = vmatpush1.msra.mxu0 0.0
        %1218 = vmatprep.subr.mxu0 0.0
        %1219 = vmatpush1.msra.mxu0 0.0
        %1220 = vmatprep.subr.mxu0 0.0
        %1221 = vmatpush1.msra.mxu0 0.0
        %1222 = vmatprep.subr.mxu0 0.0
        %1223 = vmatpush1.msra.mxu0 0.0
        %1224 = vmatprep.subr.mxu0 0.0
        %1225 = vmatpush1.msra.mxu0 0.0
        %1226 = vmatprep.subr.mxu0 0.0
        %1227 = vmatpush1.msra.mxu0 0.0
        %1228 = vmatprep.subr.mxu0 0.0
        %1229 = vmatpush1.msra.mxu0 0.0
        %1230 = vmatprep.subr.mxu0 0.0
        %1231 = vmatpush1.msra.mxu0 0.0
        %1232 = vmatprep.subr.mxu0 0.0
        %1233 = vmatpush1.msra.mxu0 0.0
        %1234 = vmatprep.subr.mxu0 0.0
        %1235 = vmatpush1.msra.mxu0 0.0
        %1236 = vmatprep.subr.mxu0 0.0
        %1237 = vmatpush1.msra.mxu0 0.0
        %1238 = vmatprep.subr.mxu0 0.0
        %1239 = vmatpush1.msra.mxu0 0.0
        %1240 = vmatprep.subr.mxu0 0.0
        %1241 = vmatpush1.msra.mxu0 0.0
        %1242 = vmatprep.subr.mxu0 0.0
        %1243 = vmatpush1.msra.mxu0 0.0
        %1244 = vmatprep.subr.mxu0 0.0
        %1245 = vmatpush1.msra.mxu0 0.0
        %1246 = vmatprep.mubr.f32.mxu0 0.0
        %1247 = vmatmul.mubr.f32.gmra.mrb[0].mxu0 %v1099
        %v1248 = vpop.f32.mrb[0].mxu0
        %v1249 = vadd.f32 %v1180, %v1248
        %v1250 = vpop.f32.mrb[0].mxu0
        %1251 = vdwg.mxu0
        %vm1252 = vcmask 64512
        %v1254 = vsel %vm1252, %v1168, 0
        %v1257 = vsel %vm1252, %v1249, 0
        %1259 = vmatprep.subr.mxu0 0.0
        %1260 = vmatpush1.xpose.msra.mxu0 %v1257
        %1261 = vmatprep.subr.mxu0 0.0
        %1262 = vmatpush1.xpose.msra.mxu0 0.0
        %1263 = vmatprep.subr.mxu0 0.0
        %1264 = vmatpush1.xpose.msra.mxu0 0.0
        %1265 = vmatprep.subr.mxu0 0.0
        %1266 = vmatpush1.xpose.msra.mxu0 0.0
        %1267 = vmatprep.subr.mxu0 0.0
        %1268 = vmatpush1.xpose.msra.mxu0 0.0
        %1269 = vmatprep.subr.mxu0 0.0
        %1270 = vmatpush1.xpose.msra.mxu0 0.0
        %1271 = vmatprep.subr.mxu0 0.0
        %1272 = vmatpush1.xpose.msra.mxu0 0.0
        %1273 = vmatprep.subr.mxu0 0.0
        %1274 = vmatpush1.xpose.msra.mxu0 0.0
        %1275 = vmatprep.subr.mxu0 0.0
        %1276 = vmatpush1.xpose.msra.mxu0 0.0
        %1277 = vmatprep.subr.mxu0 0.0
        %1278 = vmatpush1.xpose.msra.mxu0 0.0
        %1279 = vmatprep.subr.mxu0 0.0
        %1280 = vmatpush1.xpose.msra.mxu0 0.0
        %1281 = vmatprep.subr.mxu0 0.0
        %1282 = vmatpush1.xpose.msra.mxu0 0.0
        %1283 = vmatprep.subr.mxu0 0.0
        %1284 = vmatpush1.xpose.msra.mxu0 0.0
        %1285 = vmatprep.subr.mxu0 0.0
        %1286 = vmatpush1.xpose.msra.mxu0 0.0
        %1287 = vmatprep.subr.mxu0 0.0
        %1288 = vmatpush1.xpose.msra.mxu0 0.0
        %1289 = vmatprep.subr.mxu0 0.0
        %1290 = vmatpush1.xpose.msra.mxu0 0.0
        %1291 = vmatprep.subr.mxu0 0.0
        %1292 = vmatpush1.xpose.msra.mxu0 0.0
        %1293 = vmatprep.subr.mxu0 0.0
        %1294 = vmatpush1.xpose.msra.mxu0 0.0
        %1295 = vmatprep.subr.mxu0 0.0
        %1296 = vmatpush1.xpose.msra.mxu0 0.0
        %1297 = vmatprep.subr.mxu0 0.0
        %1298 = vmatpush1.xpose.msra.mxu0 0.0
        %1299 = vmatprep.subr.mxu0 0.0
        %1300 = vmatpush1.xpose.msra.mxu0 0.0
        %1301 = vmatprep.subr.mxu0 0.0
        %1302 = vmatpush1.xpose.msra.mxu0 0.0
        %1303 = vmatprep.subr.mxu0 0.0
        %1304 = vmatpush1.xpose.msra.mxu0 0.0
        %1305 = vmatprep.subr.mxu0 0.0
        %1306 = vmatpush1.xpose.msra.mxu0 0.0
        %1307 = vmatprep.subr.mxu0 0.0
        %1308 = vmatpush1.xpose.msra.mxu0 0.0
        %1309 = vmatprep.subr.mxu0 0.0
        %1310 = vmatpush1.xpose.msra.mxu0 0.0
        %1311 = vmatprep.subr.mxu0 0.0
        %1312 = vmatpush1.xpose.msra.mxu0 0.0
        %1313 = vmatprep.subr.mxu0 0.0
        %1314 = vmatpush1.xpose.msra.mxu0 0.0
        %1315 = vmatprep.subr.mxu0 0.0
        %1316 = vmatpush1.xpose.msra.mxu0 0.0
        %1317 = vmatprep.subr.mxu0 0.0
        %1318 = vmatpush1.xpose.msra.mxu0 0.0
        %1319 = vmatprep.subr.mxu0 0.0
        %1320 = vmatpush1.xpose.msra.mxu0 0.0
        %1321 = vmatprep.subr.mxu0 0.0
        %1322 = vmatpush1.xpose.msra.mxu0 0.0
        %1323 = vmatprep.mubr.f32.mxu0 0.0
        %1324 = vmatmul.mubr.f32.gmra.mrb[0].mxu0 %v1254
        %v1325 = vpop.f32.mrb[0].mxu0
        %v1326 = vadd.f32 0.0, %v1325
        %v1327 = vpop.f32.mrb[0].mxu0
        %1328 = vdwg.mxu0
        %v1329 = vmul.f32 %v1326, %v1087
        %v1330 = vsel %vm1252, %v1329, 0.0
        %1331 = vadd.xlane.f32.xlu0 %v1330
        %v1332 = vpop.xlane.xlu0 %1331
        %v1333 = vsel %vm1088, %v1326, -1e+30
        %v1334 = vsel %vm1252, %v1333, -inf
        %1335 = vmax.xlane.f32.xlu0 %v1334
        %v1336 = vpop.xlane.xlu0 %1335
        %v1337 = vmul.f32 %v1332, 0.125
        %v1338 = vsub.f32 %v1336, %v1337
        %v1339 = vmul.f32 %v1338, %v1085
        %v1340 = vsel %vm1252, %v1339, 0.0
        %v1341 = vrot.slane %v1340, 4
        %v1342 = vadd.f32 %v1340, %v1341
        %v1343 = vrot.slane %v1342, 2
        %v1344 = vadd.f32 %v1342, %v1343
        %v1345 = vrot.slane %v1344, 1
        %v1346 = vadd.f32 %v1344, %v1345
        %vm1347 = vcmp.gt.f32.partialorder %v1346, %v1338
        %vm1348 = vcmp.eq.f32.partialorder %v1346, %v1338
        %vm1349 = vmand %vm1348, %vm1086
        %vm1350 = vmor %vm1347, %vm1349
        %v1351 = vsel %vm1350, 1, 0
        %v1352 = vcvt.s32.f32 %v1351
        %v1353 = vsel %vm1252, %v1352, 0.0
        %1354 = vadd.xlane.f32.xlu0 %v1353
        %v1355 = vpop.xlane.xlu0 %1354
        %vm1356 = vcmp.lt.f32.partialorder %v1355, 3.0
        %v1357 = vmul.f32 %v1326, 0.35355338
        %v1358 = vsel %vm1252, %v1357, -inf
        %1359 = vmax.xlane.f32.xlu0 %v1358
        %v1360 = vpop.xlane.xlu0 %1359
        %v1361 = vsub.f32 %v1357, %v1360
        %v1362 = vmul.f32 %v1361, 1.442695
        %v1363 = vpow.pop %v1362
        %v1364 = vsel %vm1252, %v1363, 0.0
        %1365 = vadd.xlane.f32.xlu0 %v1364
        %v1366 = vpop.xlane.xlu0 %1365
        %v1367 = vrcp.pop %v1366
        %v1368 = vmul.f32 %v1363, %v1367
        %vm1369 = vcmp.ge.f32.partialorder %v1368, 0.125
        %v1370 = vsel %vm1356, 1, 0
        %vm1371 = vcmp.eq.s32.totalorder %v1370, 1
        %vm1372 = vmand %vm1371, %vm1369
        %v1373 = vsel %vm1372, %v1368, 0.0
        %v1374 = vadd.f32 %v1373, 0.0
        %s1375 = scalar_lea.vmem %s9, 32
        %v1376 = vld [vmem:[%s1375] sm:$0xff]
        %v1377 = vld [vmem:[%s1375 + $0x8] sm:$0xff]
        %s1378 = scalar_lea.vmem %s10, 2
        %v1379 = vld [vmem:[%s1378] sm:$0x1]
        %v1381 = vlaneseq
        %v1382 = vshrl.u32 %v1381, 7
        %v1383 = vsub.s32 0, %v1382
        %v1384 = vrot.slane %v1379, %v1383
        %1386 = vmatprep.subr.mxu0 0.0
        %1387 = vmatpush1.msra.mxu0 %v1376
        %1388 = vmatprep.subr.mxu0 0.0
        %1389 = vmatpush1.msra.mxu0 %v1377
        %1390 = vmatprep.subr.mxu0 0.0
        %1391 = vmatpush1.msra.mxu0 0.0
        %1392 = vmatprep.subr.mxu0 0.0
        %1393 = vmatpush1.msra.mxu0 0.0
        %1394 = vmatprep.subr.mxu0 0.0
        %1395 = vmatpush1.msra.mxu0 0.0
        %1396 = vmatprep.subr.mxu0 0.0
        %1397 = vmatpush1.msra.mxu0 0.0
        %1398 = vmatprep.subr.mxu0 0.0
        %1399 = vmatpush1.msra.mxu0 0.0
        %1400 = vmatprep.subr.mxu0 0.0
        %1401 = vmatpush1.msra.mxu0 0.0
        %1402 = vmatprep.subr.mxu0 0.0
        %1403 = vmatpush1.msra.mxu0 0.0
        %1404 = vmatprep.subr.mxu0 0.0
        %1405 = vmatpush1.msra.mxu0 0.0
        %1406 = vmatprep.subr.mxu0 0.0
        %1407 = vmatpush1.msra.mxu0 0.0
        %1408 = vmatprep.subr.mxu0 0.0
        %1409 = vmatpush1.msra.mxu0 0.0
        %1410 = vmatprep.subr.mxu0 0.0
        %1411 = vmatpush1.msra.mxu0 0.0
        %1412 = vmatprep.subr.mxu0 0.0
        %1413 = vmatpush1.msra.mxu0 0.0
        %1414 = vmatprep.subr.mxu0 0.0
        %1415 = vmatpush1.msra.mxu0 0.0
        %1416 = vmatprep.subr.mxu0 0.0
        %1417 = vmatpush1.msra.mxu0 0.0
        %1418 = vmatprep.subr.mxu0 0.0
        %1419 = vmatpush1.msra.mxu0 0.0
        %1420 = vmatprep.subr.mxu0 0.0
        %1421 = vmatpush1.msra.mxu0 0.0
        %1422 = vmatprep.subr.mxu0 0.0
        %1423 = vmatpush1.msra.mxu0 0.0
        %1424 = vmatprep.subr.mxu0 0.0
        %1425 = vmatpush1.msra.mxu0 0.0
        %1426 = vmatprep.subr.mxu0 0.0
        %1427 = vmatpush1.msra.mxu0 0.0
        %1428 = vmatprep.subr.mxu0 0.0
        %1429 = vmatpush1.msra.mxu0 0.0
        %1430 = vmatprep.subr.mxu0 0.0
        %1431 = vmatpush1.msra.mxu0 0.0
        %1432 = vmatprep.subr.mxu0 0.0
        %1433 = vmatpush1.msra.mxu0 0.0
        %1434 = vmatprep.subr.mxu0 0.0
        %1435 = vmatpush1.msra.mxu0 0.0
        %1436 = vmatprep.subr.mxu0 0.0
        %1437 = vmatpush1.msra.mxu0 0.0
        %1438 = vmatprep.subr.mxu0 0.0
        %1439 = vmatpush1.msra.mxu0 0.0
        %1440 = vmatprep.subr.mxu0 0.0
        %1441 = vmatpush1.msra.mxu0 0.0
        %1442 = vmatprep.subr.mxu0 0.0
        %1443 = vmatpush1.msra.mxu0 0.0
        %1444 = vmatprep.subr.mxu0 0.0
        %1445 = vmatpush1.msra.mxu0 0.0
        %1446 = vmatprep.subr.mxu0 0.0
        %1447 = vmatpush1.msra.mxu0 0.0
        %1448 = vmatprep.subr.mxu0 0.0
        %1449 = vmatpush1.msra.mxu0 0.0
        %1450 = vmatprep.mubr.f32.mxu0 0.0
        %1451 = vmatmul.mubr.f32.gmra.mrb[0].mxu0 %v1099
        %v1452 = vpop.f32.mrb[0].mxu0
        %v1453 = vadd.f32 %v1384, %v1452
        %v1454 = vpop.f32.mrb[0].mxu0
        %1455 = vdwg.mxu0
        %s1456 = scalar_lea.vmem %s9, 48
        %v1457 = vld [vmem:[%s1456] sm:$0xff]
        %v1458 = vld [vmem:[%s1456 + $0x8] sm:$0xff]
        %s1459 = scalar_lea.vmem %s10, 3
        %v1460 = vld [vmem:[%s1459] sm:$0x1]
        %v1462 = vlaneseq
        %v1463 = vshrl.u32 %v1462, 7
        %v1464 = vsub.s32 0, %v1463
        %v1465 = vrot.slane %v1460, %v1464
        %1467 = vmatprep.subr.mxu0 0.0
        %1468 = vmatpush1.msra.mxu0 %v1457
        %1469 = vmatprep.subr.mxu0 0.0
        %1470 = vmatpush1.msra.mxu0 %v1458
        %1471 = vmatprep.subr.mxu0 0.0
        %1472 = vmatpush1.msra.mxu0 0.0
        %1473 = vmatprep.subr.mxu0 0.0
        %1474 = vmatpush1.msra.mxu0 0.0
        %1475 = vmatprep.subr.mxu0 0.0
        %1476 = vmatpush1.msra.mxu0 0.0
        %1477 = vmatprep.subr.mxu0 0.0
        %1478 = vmatpush1.msra.mxu0 0.0
        %1479 = vmatprep.subr.mxu0 0.0
        %1480 = vmatpush1.msra.mxu0 0.0
        %1481 = vmatprep.subr.mxu0 0.0
        %1482 = vmatpush1.msra.mxu0 0.0
        %1483 = vmatprep.subr.mxu0 0.0
        %1484 = vmatpush1.msra.mxu0 0.0
        %1485 = vmatprep.subr.mxu0 0.0
        %1486 = vmatpush1.msra.mxu0 0.0
        %1487 = vmatprep.subr.mxu0 0.0
        %1488 = vmatpush1.msra.mxu0 0.0
        %1489 = vmatprep.subr.mxu0 0.0
        %1490 = vmatpush1.msra.mxu0 0.0
        %1491 = vmatprep.subr.mxu0 0.0
        %1492 = vmatpush1.msra.mxu0 0.0
        %1493 = vmatprep.subr.mxu0 0.0
        %1494 = vmatpush1.msra.mxu0 0.0
        %1495 = vmatprep.subr.mxu0 0.0
        %1496 = vmatpush1.msra.mxu0 0.0
        %1497 = vmatprep.subr.mxu0 0.0
        %1498 = vmatpush1.msra.mxu0 0.0
        %1499 = vmatprep.subr.mxu0 0.0
        %1500 = vmatpush1.msra.mxu0 0.0
        %1501 = vmatprep.subr.mxu0 0.0
        %1502 = vmatpush1.msra.mxu0 0.0
        %1503 = vmatprep.subr.mxu0 0.0
        %1504 = vmatpush1.msra.mxu0 0.0
        %1505 = vmatprep.subr.mxu0 0.0
        %1506 = vmatpush1.msra.mxu0 0.0
        %1507 = vmatprep.subr.mxu0 0.0
        %1508 = vmatpush1.msra.mxu0 0.0
        %1509 = vmatprep.subr.mxu0 0.0
        %1510 = vmatpush1.msra.mxu0 0.0
        %1511 = vmatprep.subr.mxu0 0.0
        %1512 = vmatpush1.msra.mxu0 0.0
        %1513 = vmatprep.subr.mxu0 0.0
        %1514 = vmatpush1.msra.mxu0 0.0
        %1515 = vmatprep.subr.mxu0 0.0
        %1516 = vmatpush1.msra.mxu0 0.0
        %1517 = vmatprep.subr.mxu0 0.0
        %1518 = vmatpush1.msra.mxu0 0.0
        %1519 = vmatprep.subr.mxu0 0.0
        %1520 = vmatpush1.msra.mxu0 0.0
        %1521 = vmatprep.subr.mxu0 0.0
        %1522 = vmatpush1.msra.mxu0 0.0
        %1523 = vmatprep.subr.mxu0 0.0
        %1524 = vmatpush1.msra.mxu0 0.0
        %1525 = vmatprep.subr.mxu0 0.0
        %1526 = vmatpush1.msra.mxu0 0.0
        %1527 = vmatprep.subr.mxu0 0.0
        %1528 = vmatpush1.msra.mxu0 0.0
        %1529 = vmatprep.subr.mxu0 0.0
        %1530 = vmatpush1.msra.mxu0 0.0
        %1531 = vmatprep.mubr.f32.mxu0 0.0
        %1532 = vmatmul.mubr.f32.gmra.mrb[0].mxu0 %v1099
        %v1533 = vpop.f32.mrb[0].mxu0
        %v1534 = vadd.f32 %v1465, %v1533
        %v1535 = vpop.f32.mrb[0].mxu0
        %1536 = vdwg.mxu0
        %v1538 = vsel %vm1252, %v1453, 0
        %v1541 = vsel %vm1252, %v1534, 0
        %1543 = vmatprep.subr.mxu0 0.0
        %1544 = vmatpush1.xpose.msra.mxu0 %v1541
        %1545 = vmatprep.subr.mxu0 0.0
        %1546 = vmatpush1.xpose.msra.mxu0 0.0
        %1547 = vmatprep.subr.mxu0 0.0
        %1548 = vmatpush1.xpose.msra.mxu0 0.0
        %1549 = vmatprep.subr.mxu0 0.0
        %1550 = vmatpush1.xpose.msra.mxu0 0.0
        %1551 = vmatprep.subr.mxu0 0.0
        %1552 = vmatpush1.xpose.msra.mxu0 0.0
        %1553 = vmatprep.subr.mxu0 0.0
        %1554 = vmatpush1.xpose.msra.mxu0 0.0
        %1555 = vmatprep.subr.mxu0 0.0
        %1556 = vmatpush1.xpose.msra.mxu0 0.0
        %1557 = vmatprep.subr.mxu0 0.0
        %1558 = vmatpush1.xpose.msra.mxu0 0.0
        %1559 = vmatprep.subr.mxu0 0.0
        %1560 = vmatpush1.xpose.msra.mxu0 0.0
        %1561 = vmatprep.subr.mxu0 0.0
        %1562 = vmatpush1.xpose.msra.mxu0 0.0
        %1563 = vmatprep.subr.mxu0 0.0
        %1564 = vmatpush1.xpose.msra.mxu0 0.0
        %1565 = vmatprep.subr.mxu0 0.0
        %1566 = vmatpush1.xpose.msra.mxu0 0.0
        %1567 = vmatprep.subr.mxu0 0.0
        %1568 = vmatpush1.xpose.msra.mxu0 0.0
        %1569 = vmatprep.subr.mxu0 0.0
        %1570 = vmatpush1.xpose.msra.mxu0 0.0
        %1571 = vmatprep.subr.mxu0 0.0
        %1572 = vmatpush1.xpose.msra.mxu0 0.0
        %1573 = vmatprep.subr.mxu0 0.0
        %1574 = vmatpush1.xpose.msra.mxu0 0.0
        %1575 = vmatprep.subr.mxu0 0.0
        %1576 = vmatpush1.xpose.msra.mxu0 0.0
        %1577 = vmatprep.subr.mxu0 0.0
        %1578 = vmatpush1.xpose.msra.mxu0 0.0
        %1579 = vmatprep.subr.mxu0 0.0
        %1580 = vmatpush1.xpose.msra.mxu0 0.0
        %1581 = vmatprep.subr.mxu0 0.0
        %1582 = vmatpush1.xpose.msra.mxu0 0.0
        %1583 = vmatprep.subr.mxu0 0.0
        %1584 = vmatpush1.xpose.msra.mxu0 0.0
        %1585 = vmatprep.subr.mxu0 0.0
        %1586 = vmatpush1.xpose.msra.mxu0 0.0
        %1587 = vmatprep.subr.mxu0 0.0
        %1588 = vmatpush1.xpose.msra.mxu0 0.0
        %1589 = vmatprep.subr.mxu0 0.0
        %1590 = vmatpush1.xpose.msra.mxu0 0.0
        %1591 = vmatprep.subr.mxu0 0.0
        %1592 = vmatpush1.xpose.msra.mxu0 0.0
        %1593 = vmatprep.subr.mxu0 0.0
        %1594 = vmatpush1.xpose.msra.mxu0 0.0
        %1595 = vmatprep.subr.mxu0 0.0
        %1596 = vmatpush1.xpose.msra.mxu0 0.0
        %1597 = vmatprep.subr.mxu0 0.0
        %1598 = vmatpush1.xpose.msra.mxu0 0.0
        %1599 = vmatprep.subr.mxu0 0.0
        %1600 = vmatpush1.xpose.msra.mxu0 0.0
        %1601 = vmatprep.subr.mxu0 0.0
        %1602 = vmatpush1.xpose.msra.mxu0 0.0
        %1603 = vmatprep.subr.mxu0 0.0
        %1604 = vmatpush1.xpose.msra.mxu0 0.0
        %1605 = vmatprep.subr.mxu0 0.0
        %1606 = vmatpush1.xpose.msra.mxu0 0.0
        %1607 = vmatprep.mubr.f32.mxu0 0.0
        %1608 = vmatmul.mubr.f32.gmra.mrb[0].mxu0 %v1538
        %v1609 = vpop.f32.mrb[0].mxu0
        %v1610 = vadd.f32 0.0, %v1609
        %v1611 = vpop.f32.mrb[0].mxu0
        %1612 = vdwg.mxu0
        %v1613 = vmul.f32 %v1610, %v1087
        %v1614 = vsel %vm1252, %v1613, 0.0
        %1615 = vadd.xlane.f32.xlu0 %v1614
        %v1616 = vpop.xlane.xlu0 %1615
        %v1617 = vsel %vm1088, %v1610, -1e+30
        %v1618 = vsel %vm1252, %v1617, -inf
        %1619 = vmax.xlane.f32.xlu0 %v1618
        %v1620 = vpop.xlane.xlu0 %1619
        %v1621 = vmul.f32 %v1616, 0.125
        %v1622 = vsub.f32 %v1620, %v1621
        %v1623 = vmul.f32 %v1622, %v1085
        %v1624 = vsel %vm1252, %v1623, 0.0
        %v1625 = vrot.slane %v1624, 4
        %v1626 = vadd.f32 %v1624, %v1625
        %v1627 = vrot.slane %v1626, 2
        %v1628 = vadd.f32 %v1626, %v1627
        %v1629 = vrot.slane %v1628, 1
        %v1630 = vadd.f32 %v1628, %v1629
        %vm1631 = vcmp.gt.f32.partialorder %v1630, %v1622
        %vm1632 = vcmp.eq.f32.partialorder %v1630, %v1622
        %vm1633 = vmand %vm1632, %vm1086
        %vm1634 = vmor %vm1631, %vm1633
        %v1635 = vsel %vm1634, 1, 0
        %v1636 = vcvt.s32.f32 %v1635
        %v1637 = vsel %vm1252, %v1636, 0.0
        %1638 = vadd.xlane.f32.xlu0 %v1637
        %v1639 = vpop.xlane.xlu0 %1638
        %vm1640 = vcmp.lt.f32.partialorder %v1639, 3.0
        %v1641 = vmul.f32 %v1610, 0.35355338
        %v1642 = vsel %vm1252, %v1641, -inf
        %1643 = vmax.xlane.f32.xlu0 %v1642
        %v1644 = vpop.xlane.xlu0 %1643
        %v1645 = vsub.f32 %v1641, %v1644
        %v1646 = vmul.f32 %v1645, 1.442695
        %v1647 = vpow.pop %v1646
        %v1648 = vsel %vm1252, %v1647, 0.0
        %1649 = vadd.xlane.f32.xlu0 %v1648
        %v1650 = vpop.xlane.xlu0 %1649
        %v1651 = vrcp.pop %v1650
        %v1652 = vmul.f32 %v1647, %v1651
        %vm1653 = vcmp.ge.f32.partialorder %v1652, 0.125
        %v1654 = vsel %vm1640, 1, 0
        %vm1655 = vcmp.eq.s32.totalorder %v1654, 1
        %vm1656 = vmand %vm1655, %vm1653
        %v1657 = vsel %vm1656, %v1652, 0.0
        %v1658 = vadd.f32 %v1374, %v1657
        %v1659 = vmul.f32 %v1658, 0.5
        %1660 = vst.msk [vmem:[%s417] sm:$0xff] %vm1252, %v1659
        %s1661 = sand.u32 %s292, 1
        %s1662 = scalar_lea.sflag [#allocation4], %s1661
        %s1663 = sand.u32 %s292, 1
        %s1664 = smul.addr %s1663, 8
        %s1665 = scalar_lea.vmem [#allocation5], %s1664
        // Predicated region
        $region73: #{_lambda_.1} parent=67 // pred_check
          %p1666 = pneg %p302
        $region74: #{_lambda_.1} parent=67 // pred_check_branch
          %1668 = sbr.rel (%p1666) target = $region76
        $region75: #{_lambda_.1} parent=67 // pred_region
          %s1670 = ssub.s32 128, 128
          %1671 = vsyncadd %s1662, %s1670
          %s1672 = smul.addr %s27, 128
          %s1673 = scalar_lea.hbm %s12, %s1672
          %s1675 = sshll.u32 %s1665, 4
          %s1676 = int_to_ptr.vmem [resolvable:$true] %s1675
          %1678 = dma.vmem_to_hbm [thread:$0]  %s1676, 128, %s1673, %s1662
        $region76: #{_lambda_.1} parent=67 // pred_fallthru
          _
      $region68: #{_lambda_.1} parent=5 // pred_fallthru
        _
      %p1679 = scmp.le.s32.totalorder 2, %s22
      // Predicated region
      $region77: #{_lambda_.1} parent=5 // pred_check
        %p1680 = pneg %p1679
      $region78: #{_lambda_.1} parent=5 // pred_check_branch
        %1682 = sbr.rel (%p1680) target = $region80
      $region79: #{_lambda_.1} parent=5 // pred_region
        %s1683 = ssub.s32 %s22, 2
        // Predicated region
        $region81: #{_lambda_.1} parent=79 // pred_check
          %p1684 = pneg %p308
        $region82: #{_lambda_.1} parent=79 // pred_check_branch
          %1686 = sbr.rel (%p1684) target = $region84
        $region83: #{_lambda_.1} parent=79 // pred_region
          %s1687 = sand.u32 %s293, 1
          %s1688 = scalar_lea.sflag [#allocation4], %s1687
          %s1689 = sand.u32 %s293, 1
          %s1690 = smul.addr %s1689, 8
          %s1691 = scalar_lea.vmem [#allocation5], %s1690
          %1692 = dma.done %s1688, 128
        $region84: #{_lambda_.1} parent=79 // pred_fallthru
          _
      $region80: #{_lambda_.1} parent=5 // pred_fallthru
        _
    $region6: #{_lambda_.1} parent=1 // loop_footer
      %s26 = sadd.s32 1, %s22
    $region7: #{_lambda_.1} parent=1 // loop_footer_branch
      %21 = sbr.rel target = $region3
    $region8: #{_lambda_.1} parent=1 // loop_exit
      _
    %1693 = vsyncpa [#allocation3], 1
    %s1694 = scalar_lea.sflag [#allocation3], 1
    %1695 = vsyncpa %s1694, 1
    %1696 = vsyncpa [#allocation4], 1
    %s1697 = scalar_lea.sflag [#allocation4], 1
    %1698 = vsyncpa %s1697, 1

</llo_original>
